<compile_context>
chip_gen: v5e
topology: v5e:2x2
jax: 0.10.0
libtpu: 0.0.40
codegen_flags: <defaults>
</compile_context>

<pallas_src>
import math

import jax
import jax.numpy as jnp
from jax.experimental import pallas as pl
from jax.experimental.pallas import tpu as pltpu


# --------------------------------------------------------------------------- #
# Kernel
# --------------------------------------------------------------------------- #
def _make_kernel(n, dx, de, tr, seq_rows):
    trn = tr * n

    def kernel(x_ref, e_ref, mcol_ref, mrow_ref, yxm_ref, yxa_ref,
               eo_wf_ref, eo_bf_ref, wqkv_ref, bqkv_ref, we_ref, be_ref,
               xo_w_ref, xo_b_ref, newx_ref, newe_ref, *rest):
        f32 = jnp.float32
        r = pl.program_id(1)
        row0 = pl.multiple_of(r * tr, 8)

        Ef = e_ref[0].reshape(trn, de)                    # (tr*n, de) raw edge rows
        xm = mcol_ref[0, pl.ds(row0, tr), :]              # (tr, 1) query-row mask
        km = mrow_ref[0]                                  # (1, n)  key / column mask

        # ---- queries for this row tile (1/sqrt(df) folded into the weights) --
        Xq = x_ref[0, pl.ds(row0, tr), :]                 # (tr, dx)
        Q = jnp.dot(Xq, wqkv_ref[0], preferred_element_type=f32) + bqkv_ref[0]

        # ---- K / V: hoisted once per batch when the row axis is sequential ---
        if seq_rows:
            estats_ref, kv_ref = rest

            @pl.when(r == 0)
            def _():
                Xf = x_ref[0]                             # (n, dx) resident block
                kv_ref[0] = (jnp.dot(Xf, wqkv_ref[1], preferred_element_type=f32)
                             + bqkv_ref[1])
                kv_ref[1] = (jnp.dot(Xf, wqkv_ref[2], preferred_element_type=f32)
                             + bqkv_ref[2])

            K = kv_ref[0]                                 # (n, dx)
            V = kv_ref[1]                                 # (n, dx)
        else:
            Xf = x_ref[0]
            K = jnp.dot(Xf, wqkv_ref[1], preferred_element_type=f32) + bqkv_ref[1]
            V = jnp.dot(Xf, wqkv_ref[2], preferred_element_type=f32) + bqkv_ref[2]

        # ---- edge FiLM coefficients ("+1" already folded into be[0]) ---------
        # Q/K/V and E1/E2 intermediate masking is skipped: for a {0,1} node_mask
        # the softmax key bias plus the final newX/newE masks make it redundant.
        E1 = (jnp.dot(Ef, we_ref[0], preferred_element_type=f32)
              + be_ref[0]).reshape(tr, n, dx)
        E2 = (jnp.dot(Ef, we_ref[1], preferred_element_type=f32)
              + be_ref[1]).reshape(tr, n, dx)

        Y = Q[:, None, :] * K[None, :, :]                 # (tr, n, dx) (scale folded)
        Y = Y * E1 + E2

        # ---- newE: y-FiLM folded into the per-batch e_out weight / bias ------
        newE = (jnp.dot(Y.reshape(trn, dx), eo_wf_ref[0],
                        preferred_element_type=f32) + eo_bf_ref[0])    # (tr*n, de)
        emask = xm[:, None, :] * km[:, :, None]                        # (tr, n, 1)
        # TODO(synk): lane-dense (bs, n, n*de) newE layout (and/or bf16 E I/O)
        # would remove the masked de<128 vst on v5e, but needs a cross-(8,128)
        # relayout of the (tr*n, de) result that Mosaic may reject.
        newe_ref[0] = newE.reshape(tr, n, de) * emask

        # ---- masked softmax over keys (additive bias) + weighted V -----------
        # NOTE: additive masking assumes padded X / E values are finite.
        kbias = (km - 1.0) * 1e30                          # (1, n): 0 valid, -1e30 masked
        Ym = Y + kbias[:, :, None]
        Ymax = jnp.max(Ym, axis=1, keepdims=True)          # (tr, 1, dx)
        expY = jnp.exp(Ym - Ymax)
        denom = jnp.sum(expY, axis=1)                      # (tr, dx)
        wV = jnp.sum(expY * V[None, :, :], axis=1)         # (tr, dx)
        # TODO(synk): torch's masked_softmax returns x unchanged when a whole row
        # of the mask is zero; harmless here because newX is masked afterwards.
        wV = wV / denom                                    # exact divide (tiny operand)

        newX = yxa_ref[0] + yxm_ref[0] * wV                # (+1 folded into yxm)
        newX = (jnp.dot(newX, xo_w_ref[...], preferred_element_type=f32)
                + xo_b_ref[...]) * xm
        newx_ref[0] = newX

        # ---- E pooling stats accumulated in-kernel (drops the 2nd HBM E read) -
        if seq_rows:
            ts = jnp.sum(Ef, axis=0, keepdims=True)        # (1, de)
            tq = jnp.sum(Ef * Ef, axis=0, keepdims=True)
            tmin = jnp.min(Ef, axis=0, keepdims=True)
            tmax = jnp.max(Ef, axis=0, keepdims=True)
            stile = jnp.concatenate([ts, tq, tmin, tmax], axis=0)      # (4, de)

            @pl.when(r == 0)
            def _():
                estats_ref[0] = stile

            @pl.when(r != 0)
            def _():
                prev = estats_ref[0]
                rows = jax.lax.broadcasted_iota(jnp.int32, (4, de), 0)
                comb = jnp.where(rows < 2, prev + stile,
                                 jnp.where(rows == 2,
                                           jnp.minimum(prev, stile),
                                           jnp.maximum(prev, stile)))
                estats_ref[0] = comb

    return kernel


# --------------------------------------------------------------------------- #
# Tiling / VMEM helpers
# --------------------------------------------------------------------------- #
def _vmem_budget_bytes():
    """~70% of physical VMEM; conservative 64 MiB (v7x per-core) fallback."""
    try:
        cap = int(pltpu.get_tpu_info().vmem_capacity_bytes)
    except Exception:
        cap = 64 * 1024 * 1024
    return max(32 * 1024 * 1024, int(cap * 0.7))


def _choose_row_tile(n, dx, de, vmem_budget):
    """Largest row tile (multiple of 8, divides n) whose working set fits,
    capped once tr*n reaches a few thousand rows (past that, bigger tiles only
    add live-range pressure; the remaining DMA latency is better hidden with
    deeper buffering on chips that have the VMEM headroom)."""
    lane = 128
    dxp = max(-(-dx // lane) * lane, lane)
    dep = max(-(-de // lane) * lane, lane)

    def est(tr):
        io = 2 * 2 * tr * n * dep * 4              # E in + newE out, double-buffered
        live = 8 * tr * n * dxp * 4                # Y/E1/E2/Ym/expY/expY*V/newE-pre/...
        fixed = (2 * n * dxp * 4                   # full-X block (double-buffered)
                 + 2 * n * dxp * 4                 # K/V VMEM scratch
                 + 8 * dxp * dxp * 4               # weight stacks (generous)
                 + 4 * 1024 * 1024)                # misc slack
        return io + live + fixed

    budget = int(vmem_budget * 0.8)                # ~20% headroom under the limit
    best = 8
    for tr in range(8, n + 1, 8):
        if n % tr != 0:
            continue
        if est(tr) > budget:
            break                                   # est is monotone in tr
        best = tr
        if tr * n >= 4096:
            break                                   # DMA already hidden
    return best


# --------------------------------------------------------------------------- #
# Wrapper
# --------------------------------------------------------------------------- #
def _y_path(X, y, ze, p, n):
    """Global-feature path (pooling over X + tiny matmuls + MLP) in plain XLA.
    `ze` is the already-pooled edge statistic vector (bs, 4*de)."""
    prec = jax.lax.Precision.HIGHEST

    def lin(v, w, b):
        return jnp.matmul(v, w, precision=prec) + b

    y_y = lin(y, p["y_y_w"], p["y_y_b"])

    xmean = X.mean(axis=1); xmin = X.min(axis=1); xmax = X.max(axis=1)
    xstd = jnp.sqrt(((X - xmean[:, None, :]) ** 2).sum(axis=1) / (n - 1))
    zx = jnp.concatenate([xmean, xmin, xmax, xstd], axis=-1)
    x_y = lin(zx, p["x_y_w"], p["x_y_b"])

    e_y = lin(ze, p["e_y_w"], p["e_y_b"])

    new_y = y_y + x_y + e_y
    h = jnp.maximum(lin(new_y, p["y_out1_w"], p["y_out1_b"]), 0.0)
    return lin(h, p["y_out2_w"], p["y_out2_b"])


def node_edge_block(X, E, y, node_mask, params, n_head, *, row_tile=None):
    bs, n, dx = X.shape
    de = E.shape[-1]
    dy = y.shape[-1]
    assert dx % n_head == 0
    # TODO(synk): pad n up to a multiple of 8 instead of asserting.
    assert n % 8 == 0, "n must be a multiple of 8 (pad in the caller)"
    df = dx // n_head
    inv_sqrt_df = 1.0 / math.sqrt(df)

    f32 = jnp.float32
    X = X.astype(f32); E = E.astype(f32); y = y.astype(f32)
    mask = node_mask.astype(f32)
    p = params
    prec = jax.lax.Precision.HIGHEST

    def lin(v, w, b):
        return jnp.matmul(v, w, precision=prec) + b

    # ---- constant folding into weights (no in-kernel slab passes) ---------- #
    wqkv = jnp.stack([p["q_w"] * inv_sqrt_df, p["k_w"], p["v_w"]], axis=0)   # (3,dx,dx)
    bqkv = jnp.stack([p["q_b"] * inv_sqrt_df, p["k_b"], p["v_b"]], axis=0)   # (3,1,dx)
    we = jnp.stack([p["e_mul_w"], p["e_add_w"]], axis=0)                     # (2,de,dx)
    be = jnp.stack([p["e_mul_b"] + 1.0, p["e_add_b"]], axis=0)               # (2,1,dx)

    # ---- per-batch y-FiLM folded into the e_out projection ------------------ #
    ye_mul1 = lin(y, p["y_e_mul_w"], p["y_e_mul_b"]) + 1.0                   # (bs, dx)
    ye_add = lin(y, p["y_e_add_w"], p["y_e_add_b"])                          # (bs, dx)
    eo_wf = ye_mul1[:, :, None] * p["e_out_w"][None, :, :]                   # (bs, dx, de)
    eo_bf = (jnp.matmul(ye_add, p["e_out_w"], precision=prec)
             + p["e_out_b"])[:, None, :]                                     # (bs, 1, de)
    yxm = (lin(y, p["y_x_mul_w"], p["y_x_mul_b"]) + 1.0)[:, None, :]         # (bs, 1, dx)
    yxa = lin(y, p["y_x_add_w"], p["y_x_add_b"])[:, None, :]                 # (bs, 1, dx)

    mcol = mask.reshape(bs, n, 1)
    mrow = mask.reshape(bs, 1, n)

    # KV hoist + in-kernel E pooling need the r axis to be sequential; keep the
    # grid fully parallel when bs == 1 so v7x's 2 TensorCores stay busy.
    seq_rows = bs >= 2

    vmem_budget = _vmem_budget_bytes()
    tr = row_tile if row_tile is not None else _choose_row_tile(n, dx, de, vmem_budget)
    assert n % tr == 0 and tr % 8 == 0

    kernel = _make_kernel(n, dx, de, tr, seq_rows)
    grid = (bs, n // tr)

    in_specs = [
        pl.BlockSpec((1, n, dx), lambda b, r: (b, 0, 0)),          # X (full, resident)
        pl.BlockSpec((1, tr, n, de), lambda b, r: (b, r, 0, 0)),   # E row block
        pl.BlockSpec((1, n, 1), lambda b, r: (b, 0, 0)),           # node mask (column)
        pl.BlockSpec((1, 1, n), lambda b, r: (b, 0, 0)),           # node mask (row)
        pl.BlockSpec((1, 1, dx), lambda b, r: (b, 0, 0)),          # y_x mul (+1)
        pl.BlockSpec((1, 1, dx), lambda b, r: (b, 0, 0)),          # y_x add
        pl.BlockSpec((1, dx, de), lambda b, r: (b, 0, 0)),         # folded e_out weight
        pl.BlockSpec((1, 1, de), lambda b, r: (b, 0, 0)),          # folded e_out bias
        pl.BlockSpec((3, dx, dx), lambda b, r: (0, 0, 0)),         # q|k|v weight stack
        pl.BlockSpec((3, 1, dx), lambda b, r: (0, 0, 0)),          # q|k|v bias stack
        pl.BlockSpec((2, de, dx), lambda b, r: (0, 0, 0)),         # e_mul|e_add weights
        pl.BlockSpec((2, 1, dx), lambda b, r: (0, 0, 0)),          # e_mul|e_add biases
        pl.BlockSpec((dx, dx), lambda b, r: (0, 0)),               # x_out weight
        pl.BlockSpec((1, dx), lambda b, r: (0, 0)),                # x_out bias
    ]

    out_specs = [
        pl.BlockSpec((1, tr, dx), lambda b, r: (b, r, 0)),
        pl.BlockSpec((1, tr, n, de), lambda b, r: (b, r, 0, 0)),
    ]
    out_shape = [
        jax.ShapeDtypeStruct((bs, n, dx), f32),
        jax.ShapeDtypeStruct((bs, n, n, de), f32),
    ]
    scratch = []
    if seq_rows:
        out_specs.append(pl.BlockSpec((1, 4, de), lambda b, r: (b, 0, 0)))  # E stats
        out_shape.append(jax.ShapeDtypeStruct((bs, 4, de), f32))
        scratch.append(pltpu.VMEM((2, n, dx), f32))                         # K/V hoist
        dims = ("parallel", "arbitrary")
    else:
        dims = ("parallel", "parallel")

    outs = pl.pallas_call(
        kernel,
        out_shape=tuple(out_shape),
        grid_spec=pltpu.PrefetchScalarGridSpec(
            num_scalar_prefetch=0,
            grid=grid,
            in_specs=in_specs,
            out_specs=out_specs,
            scratch_shapes=scratch,
        ),
        compiler_params=pltpu.CompilerParams(
            dimension_semantics=dims,
            vmem_limit_bytes=vmem_budget,
        ),
    )(X, E, mcol, mrow, yxm, yxa, eo_wf, eo_bf, wqkv, bqkv, we, be,
      p["x_out_w"], p["x_out_b"])

    # ---- finish the global-feature path (E already pooled in-kernel) -------- #
    nn_ = n * n
    if seq_rows:
        newX, newE, estats = outs
        esum, esq = estats[:, 0, :], estats[:, 1, :]
        emin, emax = estats[:, 2, :], estats[:, 3, :]
        emean = esum / nn_
        evar = jnp.maximum(esq - nn_ * emean * emean, 0.0)
        estd = jnp.sqrt(evar / (nn_ - 1))
    else:
        newX, newE = outs
        Ef = E.reshape(bs, nn_, de)
        emean = Ef.mean(axis=1); emin = Ef.min(axis=1); emax = Ef.max(axis=1)
        estd = jnp.sqrt(((Ef - emean[:, None, :]) ** 2).sum(axis=1) / (nn_ - 1))
    ze = jnp.concatenate([emean, emin, emax, estd], axis=-1)

    new_y = _y_path(X, y, ze, p, n)
    return newX, newE, new_y


# --------------------------------------------------------------------------- #
# Parameters + pure-JAX reference
# --------------------------------------------------------------------------- #
def init_params(key, dx, de, dy, n_head):
    """Deterministic synthetic parameters; weights stored as (d_in, d_out)."""
    specs = {
        "q": (dx, dx), "k": (dx, dx), "v": (dx, dx),
        "e_mul": (de, dx), "e_add": (de, dx),
        "y_e_mul": (dy, dx), "y_e_add": (dy, dx),
        "y_x_mul": (dy, dx), "y_x_add": (dy, dx),
        "y_y": (dy, dy),
        "x_y": (4 * dx, dy), "e_y": (4 * de, dy),
        "x_out": (dx, dx), "e_out": (dx, de),
        "y_out1": (dy, dy), "y_out2": (dy, dy),
    }
    params = {}
    keys = jax.random.split(key, len(specs))
    for (name, (din, dout)), k in zip(specs.items(), keys):
        kw_, kb_ = jax.random.split(k)
        params[name + "_w"] = (jax.random.normal(kw_, (din, dout), jnp.float32)
                               / math.sqrt(din))
        params[name + "_b"] = 0.01 * jax.random.normal(kb_, (1, dout), jnp.float32)
    return params


def ref_forward(X, E, y, node_mask, p, n_head):
    """Pure-JAX reference mirroring the PyTorch forward (dropouts are no-ops)."""
    bs, n, dx = X.shape
    de = E.shape[-1]
    df = dx // n_head
    prec = jax.lax.Precision.HIGHEST

    def lin(x, w, b):
        return jnp.matmul(x, w, precision=prec) + b

    xm = node_mask.astype(jnp.float32)[..., None]          # (bs, n, 1)
    e_mask1 = xm[:, :, None, :]
    e_mask2 = xm[:, None, :, :]

    Q = lin(X, p["q_w"], p["q_b"]) * xm
    K = lin(X, p["k_w"], p["k_b"]) * xm
    V = lin(X, p["v_w"], p["v_b"]) * xm

    Q5 = Q.reshape(bs, n, 1, n_head, df)
    K5 = K.reshape(bs, 1, n, n_head, df)
    Y = Q5 * K5 / math.sqrt(df)

    E1 = (lin(E, p["e_mul_w"], p["e_mul_b"]) * e_mask1 * e_mask2).reshape(
        bs, n, n, n_head, df)
    E2 = (lin(E, p["e_add_w"], p["e_add_b"]) * e_mask1 * e_mask2).reshape(
        bs, n, n, n_head, df)
    Y = Y * (E1 + 1.0) + E2

    newE = Y.reshape(bs, n, n, dx)
    ye1 = lin(y, p["y_e_add_w"], p["y_e_add_b"])[:, None, None, :]
    ye2 = lin(y, p["y_e_mul_w"], p["y_e_mul_b"])[:, None, None, :]
    newE = ye1 + (ye2 + 1.0) * newE
    newE = lin(newE, p["e_out_w"], p["e_out_b"]) * e_mask1 * e_mask2

    key_mask = node_mask.astype(jnp.float32)[:, None, :, None, None]
    Ym = jnp.where(key_mask > 0.0, Y, jnp.float32(-1e30))
    attn = jax.nn.softmax(Ym, axis=2)

    V5 = V.reshape(bs, 1, n, n_head, df)
    weighted_V = (attn * V5).sum(axis=2).reshape(bs, n, dx)
    yx1 = lin(y, p["y_x_add_w"], p["y_x_add_b"])[:, None, :]
    yx2 = lin(y, p["y_x_mul_w"], p["y_x_mul_b"])[:, None, :]
    newX = yx1 + (yx2 + 1.0) * weighted_V
    newX = lin(newX, p["x_out_w"], p["x_out_b"]) * xm

    y_y = lin(y, p["y_y_w"], p["y_y_b"])
    xmean = X.mean(axis=1); xmin = X.min(axis=1); xmax = X.max(axis=1)
    xstd = jnp.sqrt(((X - xmean[:, None, :]) ** 2).sum(axis=1) / (n - 1))
    zx = jnp.concatenate([xmean, xmin, xmax, xstd], axis=-1)
    x_y = lin(zx, p["x_y_w"], p["x_y_b"])

    Ef = E.reshape(bs, n * n, de)
    emean = Ef.mean(axis=1); emin = Ef.min(axis=1); emax = Ef.max(axis=1)
    estd = jnp.sqrt(((Ef - emean[:, None, :]) ** 2).sum(axis=1) / (n * n - 1))
    ze = jnp.concatenate([emean, emin, emax, estd], axis=-1)
    e_y = lin(ze, p["e_y_w"], p["e_y_b"])

    new_y = y_y + x_y + e_y
    h = jnp.maximum(lin(new_y, p["y_out1_w"], p["y_out1_b"]), 0.0)
    new_y = lin(h, p["y_out2_w"], p["y_out2_b"])
    return newX, newE, new_y


# --------------------------------------------------------------------------- #
# Demo / correctness check
# --------------------------------------------------------------------------- #
if __name__ == "__main__":
    bs, n, dx, de, dy, n_head = 2, 8, 32, 16, 16, 4

    key = jax.random.PRNGKey(0)
    kx, ke, ky, kp = jax.random.split(key, 4)
    X = jax.random.normal(kx, (bs, n, dx), jnp.float32)
    E = jax.random.normal(ke, (bs, n, n, de), jnp.float32)
    y = jax.random.normal(ky, (bs, dy), jnp.float32)
    node_mask = jnp.array([[1.0] * n,
                           [1.0] * 6 + [0.0] * (n - 6)], dtype=jnp.float32)
    params = init_params(kp, dx, de, dy, n_head)

    newX, newE, new_y = node_edge_block(X, E, y, node_mask, params, n_head)
    jax.block_until_ready((newX, newE, new_y))

    rX, rE, ry = ref_forward(X, E, y, node_mask, params, n_head)
    assert jnp.allclose(newX, rX, atol=2e-3, rtol=2e-3), float(jnp.max(jnp.abs(newX - rX)))
    assert jnp.allclose(newE, rE, atol=2e-3, rtol=2e-3), float(jnp.max(jnp.abs(newE - rE)))
    assert jnp.allclose(new_y, ry, atol=2e-3, rtol=2e-3), float(jnp.max(jnp.abs(new_y - ry)))

    # bs == 1 exercises the fallback path (fully parallel grid, no KV hoist /
    # in-kernel E pooling) that keeps both v7x TensorCores busy for single graphs.
    nX1, nE1, ny1 = node_edge_block(X[:1], E[:1], y[:1], node_mask[:1], params, n_head)
    jax.block_until_ready((nX1, nE1, ny1))
    assert jnp.allclose(nX1, rX[:1], atol=2e-3, rtol=2e-3)
    assert jnp.allclose(nE1, rE[:1], atol=2e-3, rtol=2e-3)
    assert jnp.allclose(ny1, ry[:1], atol=2e-3, rtol=2e-3)

    print("KERNEL_OK")
</pallas_src>

<mosaic_0001>
module attributes {stable_mosaic.version = 11 : i64} {
  func.func @kernel(%arg0: i32, %arg1: i32, %arg2: memref<1x8x32xf32, #tpu.memory_space<vmem>>, %arg3: memref<1x8x8x16xf32, #tpu.memory_space<vmem>>, %arg4: memref<1x8x1xf32, #tpu.memory_space<vmem>>, %arg5: memref<1x1x8xf32, #tpu.memory_space<vmem>>, %arg6: memref<1x1x32xf32, #tpu.memory_space<vmem>>, %arg7: memref<1x1x32xf32, #tpu.memory_space<vmem>>, %arg8: memref<1x32x16xf32, #tpu.memory_space<vmem>>, %arg9: memref<1x1x16xf32, #tpu.memory_space<vmem>>, %arg10: memref<3x32x32xf32, #tpu.memory_space<vmem>>, %arg11: memref<3x1x32xf32, #tpu.memory_space<vmem>>, %arg12: memref<2x16x32xf32, #tpu.memory_space<vmem>>, %arg13: memref<2x1x32xf32, #tpu.memory_space<vmem>>, %arg14: memref<32x32xf32, #tpu.memory_space<vmem>>, %arg15: memref<1x32xf32, #tpu.memory_space<vmem>>, %arg16: memref<1x8x32xf32, #tpu.memory_space<vmem>>, %arg17: memref<1x8x8x16xf32, #tpu.memory_space<vmem>>, %arg18: memref<1x4x16xf32, #tpu.memory_space<vmem>>, %arg19: memref<2x8x32xf32, #tpu.memory_space<vmem>>) attributes {dimension_semantics = [#tpu.dimension_semantics<parallel>, #tpu.dimension_semantics<arbitrary>], iteration_bounds = array<i64: 2, 1>, scalar_prefetch = 0 : i64, scratch_operands = 1 : i64, tpu.core_type = #tpu.core_type<tc>, window_params = [{transform_indices = @transform_0, window_bounds = array<i64: 1, 8, 32>}, {transform_indices = @transform_1, window_bounds = array<i64: 1, 8, 8, 16>}, {transform_indices = @transform_2, window_bounds = array<i64: 1, 8, 1>}, {transform_indices = @transform_3, window_bounds = array<i64: 1, 1, 8>}, {transform_indices = @transform_4, window_bounds = array<i64: 1, 1, 32>}, {transform_indices = @transform_5, window_bounds = array<i64: 1, 1, 32>}, {transform_indices = @transform_6, window_bounds = array<i64: 1, 32, 16>}, {transform_indices = @transform_7, window_bounds = array<i64: 1, 1, 16>}, {pipeline_mode = #tpu.pipeline_mode<synchronous>, transform_indices = @transform_8, window_bounds = array<i64: 3, 32, 32>}, {pipeline_mode = #tpu.pipeline_mode<synchronous>, transform_indices = @transform_9, window_bounds = array<i64: 3, 1, 32>}, {pipeline_mode = #tpu.pipeline_mode<synchronous>, transform_indices = @transform_10, window_bounds = array<i64: 2, 16, 32>}, {pipeline_mode = #tpu.pipeline_mode<synchronous>, transform_indices = @transform_11, window_bounds = array<i64: 2, 1, 32>}, {pipeline_mode = #tpu.pipeline_mode<synchronous>, transform_indices = @transform_12, window_bounds = array<i64: 32, 32>}, {pipeline_mode = #tpu.pipeline_mode<synchronous>, transform_indices = @transform_13, window_bounds = array<i64: 1, 32>}, {transform_indices = @transform_14, window_bounds = array<i64: 1, 8, 32>}, {transform_indices = @transform_15, window_bounds = array<i64: 1, 8, 8, 16>}, {transform_indices = @transform_16, window_bounds = array<i64: 1, 4, 16>}]} {
    %c8_i32 = arith.constant 8 : i32
    %0 = arith.muli %arg1, %c8_i32 : i32
    %1 = tpu.assume_multiple %0, 8 : i32
    %c0 = arith.constant 0 : index
    %c0_0 = arith.constant 0 : index
    %c0_1 = arith.constant 0 : index
    %c0_2 = arith.constant 0 : index
    %2 = vector.load %arg3[%c0, %c0_0, %c0_1, %c0_2] : memref<1x8x8x16xf32, #tpu.memory_space<vmem>>, vector<1x8x8x16xf32>
    %3 = vector.shape_cast %2 : vector<1x8x8x16xf32> to vector<8x8x16xf32>
    %4 = vector.shape_cast %3 : vector<8x8x16xf32> to vector<64x16xf32>
    %c0_3 = arith.constant 0 : index
    %5 = arith.index_cast %1 : i32 to index
    %c0_4 = arith.constant 0 : index
    %6 = vector.load %arg4[%c0_3, %5, %c0_4] : memref<1x8x1xf32, #tpu.memory_space<vmem>>, vector<1x8x1xf32>
    %7 = vector.shape_cast %6 : vector<1x8x1xf32> to vector<8x1xf32>
    %c0_5 = arith.constant 0 : index
    %c0_6 = arith.constant 0 : index
    %c0_7 = arith.constant 0 : index
    %8 = vector.load %arg5[%c0_5, %c0_6, %c0_7] : memref<1x1x8xf32, #tpu.memory_space<vmem>>, vector<1x1x8xf32>
    %9 = vector.shape_cast %8 : vector<1x1x8xf32> to vector<1x8xf32>
    %c0_8 = arith.constant 0 : index
    %10 = arith.index_cast %1 : i32 to index
    %c0_9 = arith.constant 0 : index
    %11 = vector.load %arg2[%c0_8, %10, %c0_9] : memref<1x8x32xf32, #tpu.memory_space<vmem>>, vector<1x8x32xf32>
    %12 = vector.shape_cast %11 : vector<1x8x32xf32> to vector<8x32xf32>
    %c0_10 = arith.constant 0 : index
    %c0_11 = arith.constant 0 : index
    %c0_12 = arith.constant 0 : index
    %13 = vector.load %arg10[%c0_10, %c0_11, %c0_12] : memref<3x32x32xf32, #tpu.memory_space<vmem>>, vector<1x32x32xf32>
    %14 = vector.shape_cast %13 : vector<1x32x32xf32> to vector<32x32xf32>
    %cst = arith.constant dense<0.000000e+00> : vector<8x32xf32>
    %15 = tpu.matmul %12, %14, %cst {dimension_numbers = #tpu.dot_dimension_numbers<[1], [0], [0], [1], [0, 0, 1, 1], [], []>} : vector<8x32xf32>, vector<32x32xf32>, vector<8x32xf32> -> vector<8x32xf32>
    %c0_13 = arith.constant 0 : index
    %c0_14 = arith.constant 0 : index
    %c0_15 = arith.constant 0 : index
    %16 = vector.load %arg11[%c0_13, %c0_14, %c0_15] : memref<3x1x32xf32, #tpu.memory_space<vmem>>, vector<1x1x32xf32>
    %17 = vector.shape_cast %16 : vector<1x1x32xf32> to vector<1x32xf32>
    %18 = vector.broadcast %17 : vector<1x32xf32> to vector<8x32xf32>
    %19 = arith.addf %15, %18 : vector<8x32xf32>
    %c0_i32 = arith.constant 0 : i32
    %20 = arith.cmpi eq, %arg1, %c0_i32 : i32
    %21 = arith.extui %20 : i1 to i32
    %c0_i32_16 = arith.constant 0 : i32
    %22 = arith.cmpi ne, %21, %c0_i32_16 : i32
    scf.if %22 {
      %c0_74 = arith.constant 0 : index
      %c0_75 = arith.constant 0 : index
      %c0_76 = arith.constant 0 : index
      %121 = vector.load %arg2[%c0_74, %c0_75, %c0_76] : memref<1x8x32xf32, #tpu.memory_space<vmem>>, vector<1x8x32xf32>
      %122 = vector.shape_cast %121 : vector<1x8x32xf32> to vector<8x32xf32>
      %c1_77 = arith.constant 1 : index
      %c0_78 = arith.constant 0 : index
      %c0_79 = arith.constant 0 : index
      %123 = vector.load %arg10[%c1_77, %c0_78, %c0_79] : memref<3x32x32xf32, #tpu.memory_space<vmem>>, vector<1x32x32xf32>
      %124 = vector.shape_cast %123 : vector<1x32x32xf32> to vector<32x32xf32>
      %cst_80 = arith.constant dense<0.000000e+00> : vector<8x32xf32>
      %125 = tpu.matmul %122, %124, %cst_80 {dimension_numbers = #tpu.dot_dimension_numbers<[1], [0], [0], [1], [0, 0, 1, 1], [], []>} : vector<8x32xf32>, vector<32x32xf32>, vector<8x32xf32> -> vector<8x32xf32>
      %c1_81 = arith.constant 1 : index
      %c0_82 = arith.constant 0 : index
      %c0_83 = arith.constant 0 : index
      %126 = vector.load %arg11[%c1_81, %c0_82, %c0_83] : memref<3x1x32xf32, #tpu.memory_space<vmem>>, vector<1x1x32xf32>
      %127 = vector.shape_cast %126 : vector<1x1x32xf32> to vector<1x32xf32>
      %128 = vector.broadcast %127 : vector<1x32xf32> to vector<8x32xf32>
      %129 = arith.addf %125, %128 : vector<8x32xf32>
      %c0_84 = arith.constant 0 : index
      %c0_85 = arith.constant 0 : index
      %c0_86 = arith.constant 0 : index
      %130 = vector.load %arg19[%c0_84, %c0_85, %c0_86] : memref<2x8x32xf32, #tpu.memory_space<vmem>>, vector<1x8x32xf32>
      %131 = vector.shape_cast %130 : vector<1x8x32xf32> to vector<8x32xf32>
      %132 = vector.shape_cast %129 : vector<8x32xf32> to vector<1x8x32xf32>
      tpu.vector_store %arg19[%c0_84, %c0_85, %c0_86], %132 {strides = array<i32>} : memref<2x8x32xf32, #tpu.memory_space<vmem>>, vector<1x8x32xf32>,
      %c2 = arith.constant 2 : index
      %c0_87 = arith.constant 0 : index
      %c0_88 = arith.constant 0 : index
      %133 = vector.load %arg10[%c2, %c0_87, %c0_88] : memref<3x32x32xf32, #tpu.memory_space<vmem>>, vector<1x32x32xf32>
      %134 = vector.shape_cast %133 : vector<1x32x32xf32> to vector<32x32xf32>
      %cst_89 = arith.constant dense<0.000000e+00> : vector<8x32xf32>
      %135 = tpu.matmul %122, %134, %cst_89 {dimension_numbers = #tpu.dot_dimension_numbers<[1], [0], [0], [1], [0, 0, 1, 1], [], []>} : vector<8x32xf32>, vector<32x32xf32>, vector<8x32xf32> -> vector<8x32xf32>
      %c2_90 = arith.constant 2 : index
      %c0_91 = arith.constant 0 : index
      %c0_92 = arith.constant 0 : index
      %136 = vector.load %arg11[%c2_90, %c0_91, %c0_92] : memref<3x1x32xf32, #tpu.memory_space<vmem>>, vector<1x1x32xf32>
      %137 = vector.shape_cast %136 : vector<1x1x32xf32> to vector<1x32xf32>
      %138 = vector.broadcast %137 : vector<1x32xf32> to vector<8x32xf32>
      %139 = arith.addf %135, %138 : vector<8x32xf32>
      %c1_93 = arith.constant 1 : index
      %c0_94 = arith.constant 0 : index
      %c0_95 = arith.constant 0 : index
      %140 = vector.load %arg19[%c1_93, %c0_94, %c0_95] : memref<2x8x32xf32, #tpu.memory_space<vmem>>, vector<1x8x32xf32>
      %141 = vector.shape_cast %140 : vector<1x8x32xf32> to vector<8x32xf32>
      %142 = vector.shape_cast %139 : vector<8x32xf32> to vector<1x8x32xf32>
      tpu.vector_store %arg19[%c1_93, %c0_94, %c0_95], %142 {strides = array<i32>} : memref<2x8x32xf32, #tpu.memory_space<vmem>>, vector<1x8x32xf32>,
    } else {
    }
    %c0_17 = arith.constant 0 : index
    %c0_18 = arith.constant 0 : index
    %c0_19 = arith.constant 0 : index
    %23 = vector.load %arg19[%c0_17, %c0_18, %c0_19] : memref<2x8x32xf32, #tpu.memory_space<vmem>>, vector<1x8x32xf32>
    %24 = vector.shape_cast %23 : vector<1x8x32xf32> to vector<8x32xf32>
    %c1 = arith.constant 1 : index
    %c0_20 = arith.constant 0 : index
    %c0_21 = arith.constant 0 : index
    %25 = vector.load %arg19[%c1, %c0_20, %c0_21] : memref<2x8x32xf32, #tpu.memory_space<vmem>>, vector<1x8x32xf32>
    %26 = vector.shape_cast %25 : vector<1x8x32xf32> to vector<8x32xf32>
    %c0_22 = arith.constant 0 : index
    %c0_23 = arith.constant 0 : index
    %c0_24 = arith.constant 0 : index
    %27 = vector.load %arg12[%c0_22, %c0_23, %c0_24] : memref<2x16x32xf32, #tpu.memory_space<vmem>>, vector<1x16x32xf32>
    %28 = vector.shape_cast %27 : vector<1x16x32xf32> to vector<16x32xf32>
    %cst_25 = arith.constant dense<0.000000e+00> : vector<64x32xf32>
    %29 = tpu.matmul %4, %28, %cst_25 {dimension_numbers = #tpu.dot_dimension_numbers<[1], [0], [0], [1], [0, 0, 1, 1], [], []>} : vector<64x16xf32>, vector<16x32xf32>, vector<64x32xf32> -> vector<64x32xf32>
    %c0_26 = arith.constant 0 : index
    %c0_27 = arith.constant 0 : index
    %c0_28 = arith.constant 0 : index
    %30 = vector.load %arg13[%c0_26, %c0_27, %c0_28] : memref<2x1x32xf32, #tpu.memory_space<vmem>>, vector<1x1x32xf32>
    %31 = vector.shape_cast %30 : vector<1x1x32xf32> to vector<1x32xf32>
    %32 = vector.broadcast %31 : vector<1x32xf32> to vector<64x32xf32>
    %33 = arith.addf %29, %32 : vector<64x32xf32>
    %34 = vector.shape_cast %33 : vector<64x32xf32> to vector<8x8x32xf32>
    %c1_29 = arith.constant 1 : index
    %c0_30 = arith.constant 0 : index
    %c0_31 = arith.constant 0 : index
    %35 = vector.load %arg12[%c1_29, %c0_30, %c0_31] : memref<2x16x32xf32, #tpu.memory_space<vmem>>, vector<1x16x32xf32>
    %36 = vector.shape_cast %35 : vector<1x16x32xf32> to vector<16x32xf32>
    %cst_32 = arith.constant dense<0.000000e+00> : vector<64x32xf32>
    %37 = tpu.matmul %4, %36, %cst_32 {dimension_numbers = #tpu.dot_dimension_numbers<[1], [0], [0], [1], [0, 0, 1, 1], [], []>} : vector<64x16xf32>, vector<16x32xf32>, vector<64x32xf32> -> vector<64x32xf32>
    %c1_33 = arith.constant 1 : index
    %c0_34 = arith.constant 0 : index
    %c0_35 = arith.constant 0 : index
    %38 = vector.load %arg13[%c1_33, %c0_34, %c0_35] : memref<2x1x32xf32, #tpu.memory_space<vmem>>, vector<1x1x32xf32>
    %39 = vector.shape_cast %38 : vector<1x1x32xf32> to vector<1x32xf32>
    %40 = vector.broadcast %39 : vector<1x32xf32> to vector<64x32xf32>
    %41 = arith.addf %37, %40 : vector<64x32xf32>
    %42 = vector.shape_cast %41 : vector<64x32xf32> to vector<8x8x32xf32>
    %43 = vector.shape_cast %19 : vector<8x32xf32> to vector<8x1x32xf32>
    %44 = vector.shape_cast %24 : vector<8x32xf32> to vector<1x8x32xf32>
    %45 = vector.broadcast %43 : vector<8x1x32xf32> to vector<8x8x32xf32>
    %46 = vector.broadcast %44 : vector<1x8x32xf32> to vector<8x8x32xf32>
    %47 = arith.mulf %45, %46 : vector<8x8x32xf32>
    %48 = arith.mulf %47, %34 : vector<8x8x32xf32>
    %49 = arith.addf %48, %42 : vector<8x8x32xf32>
    %50 = vector.shape_cast %49 : vector<8x8x32xf32> to vector<64x32xf32>
    %c0_36 = arith.constant 0 : index
    %c0_37 = arith.constant 0 : index
    %c0_38 = arith.constant 0 : index
    %51 = vector.load %arg8[%c0_36, %c0_37, %c0_38] : memref<1x32x16xf32, #tpu.memory_space<vmem>>, vector<1x32x16xf32>
    %52 = vector.shape_cast %51 : vector<1x32x16xf32> to vector<32x16xf32>
    %cst_39 = arith.constant dense<0.000000e+00> : vector<64x16xf32>
    %53 = tpu.matmul %50, %52, %cst_39 {dimension_numbers = #tpu.dot_dimension_numbers<[1], [0], [0], [1], [0, 0, 1, 1], [], []>} : vector<64x32xf32>, vector<32x16xf32>, vector<64x16xf32> -> vector<64x16xf32>
    %c0_40 = arith.constant 0 : index
    %c0_41 = arith.constant 0 : index
    %c0_42 = arith.constant 0 : index
    %54 = vector.load %arg9[%c0_40, %c0_41, %c0_42] : memref<1x1x16xf32, #tpu.memory_space<vmem>>, vector<1x1x16xf32>
    %55 = vector.shape_cast %54 : vector<1x1x16xf32> to vector<1x16xf32>
    %56 = vector.broadcast %55 : vector<1x16xf32> to vector<64x16xf32>
    %57 = arith.addf %53, %56 : vector<64x16xf32>
    %58 = vector.shape_cast %7 : vector<8x1xf32> to vector<8x1x1xf32>
    %59 = vector.shape_cast %9 : vector<1x8xf32> to vector<1x8x1xf32>
    %60 = vector.broadcast %58 : vector<8x1x1xf32> to vector<8x8x1xf32>
    %61 = vector.broadcast %59 : vector<1x8x1xf32> to vector<8x8x1xf32>
    %62 = arith.mulf %60, %61 : vector<8x8x1xf32>
    %63 = vector.shape_cast %57 : vector<64x16xf32> to vector<8x8x16xf32>
    %64 = vector.broadcast %62 : vector<8x8x1xf32> to vector<8x8x16xf32>
    %65 = arith.mulf %63, %64 : vector<8x8x16xf32>
    %c0_43 = arith.constant 0 : index
    %c0_44 = arith.constant 0 : index
    %c0_45 = arith.constant 0 : index
    %c0_46 = arith.constant 0 : index
    %66 = vector.load %arg17[%c0_43, %c0_44, %c0_45, %c0_46] : memref<1x8x8x16xf32, #tpu.memory_space<vmem>>, vector<1x8x8x16xf32>
    %67 = vector.shape_cast %66 : vector<1x8x8x16xf32> to vector<8x8x16xf32>
    %68 = vector.shape_cast %65 : vector<8x8x16xf32> to vector<1x8x8x16xf32>
    tpu.vector_store %arg17[%c0_43, %c0_44, %c0_45, %c0_46], %68 {strides = array<i32>} : memref<1x8x8x16xf32, #tpu.memory_space<vmem>>, vector<1x8x8x16xf32>,
    %cst_47 = arith.constant 1.000000e+00 : f32
    %69 = vector.broadcast %cst_47 : f32 to vector<1x8xf32>
    %70 = arith.subf %9, %69 : vector<1x8xf32>
    %cst_48 = arith.constant 1.000000e+30 : f32
    %71 = vector.broadcast %cst_48 : f32 to vector<1x8xf32>
    %72 = arith.mulf %70, %71 : vector<1x8xf32>
    %73 = vector.shape_cast %72 : vector<1x8xf32> to vector<1x8x1xf32>
    %74 = vector.broadcast %73 : vector<1x8x1xf32> to vector<8x8x32xf32>
    %75 = arith.addf %49, %74 : vector<8x8x32xf32>
    %cst_49 = arith.constant dense<0xFF800000> : vector<8x32xf32>
    %76 = vector.multi_reduction <maximumf>, %75, %cst_49 [1] : vector<8x8x32xf32> to vector<8x32xf32>
    %77 = vector.shape_cast %76 : vector<8x32xf32> to vector<8x1x32xf32>
    %78 = vector.broadcast %77 : vector<8x1x32xf32> to vector<8x8x32xf32>
    %79 = arith.subf %75, %78 : vector<8x8x32xf32>
    %80 = math.exp %79 : vector<8x8x32xf32>
    %cst_50 = arith.constant dense<0.000000e+00> : vector<8x32xf32>
    %81 = vector.multi_reduction <add>, %80, %cst_50 [1] : vector<8x8x32xf32> to vector<8x32xf32>
    %82 = vector.shape_cast %26 : vector<8x32xf32> to vector<1x8x32xf32>
    %83 = vector.broadcast %82 : vector<1x8x32xf32> to vector<8x8x32xf32>
    %84 = arith.mulf %80, %83 : vector<8x8x32xf32>
    %cst_51 = arith.constant dense<0.000000e+00> : vector<8x32xf32>
    %85 = vector.multi_reduction <add>, %84, %cst_51 [1] : vector<8x8x32xf32> to vector<8x32xf32>
    %86 = arith.divf %85, %81 : vector<8x32xf32>
    %c0_52 = arith.constant 0 : index
    %c0_53 = arith.constant 0 : index
    %c0_54 = arith.constant 0 : index
    %87 = vector.load %arg7[%c0_52, %c0_53, %c0_54] : memref<1x1x32xf32, #tpu.memory_space<vmem>>, vector<1x1x32xf32>
    %88 = vector.shape_cast %87 : vector<1x1x32xf32> to vector<1x32xf32>
    %c0_55 = arith.constant 0 : index
    %c0_56 = arith.constant 0 : index
    %c0_57 = arith.constant 0 : index
    %89 = vector.load %arg6[%c0_55, %c0_56, %c0_57] : memref<1x1x32xf32, #tpu.memory_space<vmem>>, vector<1x1x32xf32>
    %90 = vector.shape_cast %89 : vector<1x1x32xf32> to vector<1x32xf32>
    %91 = vector.broadcast %90 : vector<1x32xf32> to vector<8x32xf32>
    %92 = arith.mulf %91, %86 : vector<8x32xf32>
    %93 = vector.broadcast %88 : vector<1x32xf32> to vector<8x32xf32>
    %94 = arith.addf %93, %92 : vector<8x32xf32>
    %c0_58 = arith.constant 0 : index
    %c0_59 = arith.constant 0 : index
    %95 = vector.load %arg14[%c0_58, %c0_59] : memref<32x32xf32, #tpu.memory_space<vmem>>, vector<32x32xf32>
    %cst_60 = arith.constant dense<0.000000e+00> : vector<8x32xf32>
    %96 = tpu.matmul %94, %95, %cst_60 {dimension_numbers = #tpu.dot_dimension_numbers<[1], [0], [0], [1], [0, 0, 1, 1], [], []>} : vector<8x32xf32>, vector<32x32xf32>, vector<8x32xf32> -> vector<8x32xf32>
    %c0_61 = arith.constant 0 : index
    %c0_62 = arith.constant 0 : index
    %97 = vector.load %arg15[%c0_61, %c0_62] : memref<1x32xf32, #tpu.memory_space<vmem>>, vector<1x32xf32>
    %98 = vector.broadcast %97 : vector<1x32xf32> to vector<8x32xf32>
    %99 = arith.addf %96, %98 : vector<8x32xf32>
    %100 = vector.broadcast %7 : vector<8x1xf32> to vector<8x32xf32>
    %101 = arith.mulf %99, %100 : vector<8x32xf32>
    %c0_63 = arith.constant 0 : index
    %c0_64 = arith.constant 0 : index
    %c0_65 = arith.constant 0 : index
    %102 = vector.load %arg16[%c0_63, %c0_64, %c0_65] : memref<1x8x32xf32, #tpu.memory_space<vmem>>, vector<1x8x32xf32>
    %103 = vector.shape_cast %102 : vector<1x8x32xf32> to vector<8x32xf32>
    %104 = vector.shape_cast %101 : vector<8x32xf32> to vector<1x8x32xf32>
    tpu.vector_store %arg16[%c0_63, %c0_64, %c0_65], %104 {strides = array<i32>} : memref<1x8x32xf32, #tpu.memory_space<vmem>>, vector<1x8x32xf32>,
    %cst_66 = arith.constant dense<0.000000e+00> : vector<16xf32>
    %105 = vector.multi_reduction <add>, %4, %cst_66 [0] : vector<64x16xf32> to vector<16xf32>
    %106 = vector.shape_cast %105 : vector<16xf32> to vector<1x16xf32>
    %107 = arith.mulf %4, %4 : vector<64x16xf32>
    %cst_67 = arith.constant dense<0.000000e+00> : vector<16xf32>
    %108 = vector.multi_reduction <add>, %107, %cst_67 [0] : vector<64x16xf32> to vector<16xf32>
    %109 = vector.shape_cast %108 : vector<16xf32> to vector<1x16xf32>
    %cst_68 = arith.constant dense<0x7F800000> : vector<16xf32>
    %110 = vector.multi_reduction <minimumf>, %4, %cst_68 [0] : vector<64x16xf32> to vector<16xf32>
    %111 = vector.shape_cast %110 : vector<16xf32> to vector<1x16xf32>
    %cst_69 = arith.constant dense<0xFF800000> : vector<16xf32>
    %112 = vector.multi_reduction <maximumf>, %4, %cst_69 [0] : vector<64x16xf32> to vector<16xf32>
    %113 = vector.shape_cast %112 : vector<16xf32> to vector<1x16xf32>
    %114 = tpu.concatenate %106, %109, %111, %113 in 0 : vector<1x16xf32>, vector<1x16xf32>, vector<1x16xf32>, vector<1x16xf32> -> vector<4x16xf32>
    %c0_i32_70 = arith.constant 0 : i32
    %115 = arith.cmpi eq, %arg1, %c0_i32_70 : i32
    %116 = arith.extui %115 : i1 to i32
    %c0_i32_71 = arith.constant 0 : i32
    %117 = arith.cmpi ne, %116, %c0_i32_71 : i32
    scf.if %117 {
      %c0_74 = arith.constant 0 : index
      %c0_75 = arith.constant 0 : index
      %c0_76 = arith.constant 0 : index
      %121 = vector.load %arg18[%c0_74, %c0_75, %c0_76] : memref<1x4x16xf32, #tpu.memory_space<vmem>>, vector<1x4x16xf32>
      %122 = vector.shape_cast %121 : vector<1x4x16xf32> to vector<4x16xf32>
      %123 = vector.shape_cast %114 : vector<4x16xf32> to vector<1x4x16xf32>
      tpu.vector_store %arg18[%c0_74, %c0_75, %c0_76], %123 {strides = array<i32>} : memref<1x4x16xf32, #tpu.memory_space<vmem>>, vector<1x4x16xf32>,
    } else {
    }
    %c0_i32_72 = arith.constant 0 : i32
    %118 = arith.cmpi ne, %arg1, %c0_i32_72 : i32
    %119 = arith.extui %118 : i1 to i32
    %c0_i32_73 = arith.constant 0 : i32
    %120 = arith.cmpi ne, %119, %c0_i32_73 : i32
    scf.if %120 {
      %c0_74 = arith.constant 0 : index
      %c0_75 = arith.constant 0 : index
      %c0_76 = arith.constant 0 : index
      %121 = vector.load %arg18[%c0_74, %c0_75, %c0_76] : memref<1x4x16xf32, #tpu.memory_space<vmem>>, vector<1x4x16xf32>
      %122 = vector.shape_cast %121 : vector<1x4x16xf32> to vector<4x16xf32>
      %123 = tpu.iota {dimensions = array<i32: 0>} : vector<4x16xi32>
      %c2_i32 = arith.constant 2 : i32
      %124 = vector.broadcast %c2_i32 : i32 to vector<4x16xi32>
      %125 = arith.cmpi slt, %123, %124 : vector<4x16xi32>
      %126 = arith.addf %122, %114 : vector<4x16xf32>
      %c2_i32_77 = arith.constant 2 : i32
      %127 = vector.broadcast %c2_i32_77 : i32 to vector<4x16xi32>
      %128 = arith.cmpi eq, %123, %127 : vector<4x16xi32>
      %129 = arith.minimumf %122, %114 : vector<4x16xf32>
      %130 = arith.maximumf %122, %114 : vector<4x16xf32>
      %131 = arith.select %128, %129, %130 : vector<4x16xi1>, vector<4x16xf32>
      %132 = arith.select %125, %126, %131 : vector<4x16xi1>, vector<4x16xf32>
      %c0_78 = arith.constant 0 : index
      %c0_79 = arith.constant 0 : index
      %c0_80 = arith.constant 0 : index
      %133 = vector.load %arg18[%c0_78, %c0_79, %c0_80] : memref<1x4x16xf32, #tpu.memory_space<vmem>>, vector<1x4x16xf32>
      %134 = vector.shape_cast %133 : vector<1x4x16xf32> to vector<4x16xf32>
      %135 = vector.shape_cast %132 : vector<4x16xf32> to vector<1x4x16xf32>
      tpu.vector_store %arg18[%c0_78, %c0_79, %c0_80], %135 {strides = array<i32>} : memref<1x4x16xf32, #tpu.memory_space<vmem>>, vector<1x4x16xf32>,
    } else {
    }
    return
  }
  func.func @transform_0(%arg0: i32, %arg1: i32) -> (i32, i32, i32) {
    %c0_i32 = arith.constant 0 : i32
    %c0_i32_0 = arith.constant 0 : i32
    %c0_i32_1 = arith.constant 0 : i32
    return %arg0, %c0_i32, %c0_i32_0 : i32, i32, i32
  }
  func.func @transform_1(%arg0: i32, %arg1: i32) -> (i32, i32, i32, i32) {
    %c0_i32 = arith.constant 0 : i32
    %c0_i32_0 = arith.constant 0 : i32
    %c0_i32_1 = arith.constant 0 : i32
    return %arg0, %arg1, %c0_i32, %c0_i32_0 : i32, i32, i32, i32
  }
  func.func @transform_2(%arg0: i32, %arg1: i32) -> (i32, i32, i32) {
    %c0_i32 = arith.constant 0 : i32
    %c0_i32_0 = arith.constant 0 : i32
    %c0_i32_1 = arith.constant 0 : i32
    return %arg0, %c0_i32, %c0_i32_0 : i32, i32, i32
  }
  func.func @transform_3(%arg0: i32, %arg1: i32) -> (i32, i32, i32) {
    %c0_i32 = arith.constant 0 : i32
    %c0_i32_0 = arith.constant 0 : i32
    %c0_i32_1 = arith.constant 0 : i32
    return %arg0, %c0_i32, %c0_i32_0 : i32, i32, i32
  }
  func.func @transform_4(%arg0: i32, %arg1: i32) -> (i32, i32, i32) {
    %c0_i32 = arith.constant 0 : i32
    %c0_i32_0 = arith.constant 0 : i32
    %c0_i32_1 = arith.constant 0 : i32
    return %arg0, %c0_i32, %c0_i32_0 : i32, i32, i32
  }
  func.func @transform_5(%arg0: i32, %arg1: i32) -> (i32, i32, i32) {
    %c0_i32 = arith.constant 0 : i32
    %c0_i32_0 = arith.constant 0 : i32
    %c0_i32_1 = arith.constant 0 : i32
    return %arg0, %c0_i32, %c0_i32_0 : i32, i32, i32
  }
  func.func @transform_6(%arg0: i32, %arg1: i32) -> (i32, i32, i32) {
    %c0_i32 = arith.constant 0 : i32
    %c0_i32_0 = arith.constant 0 : i32
    %c0_i32_1 = arith.constant 0 : i32
    return %arg0, %c0_i32, %c0_i32_0 : i32, i32, i32
  }
  func.func @transform_7(%arg0: i32, %arg1: i32) -> (i32, i32, i32) {
    %c0_i32 = arith.constant 0 : i32
    %c0_i32_0 = arith.constant 0 : i32
    %c0_i32_1 = arith.constant 0 : i32
    return %arg0, %c0_i32, %c0_i32_0 : i32, i32, i32
  }
  func.func @transform_8(%arg0: i32, %arg1: i32) -> (i32, i32, i32) {
    %c0_i32 = arith.constant 0 : i32
    %c0_i32_0 = arith.constant 0 : i32
    %c0_i32_1 = arith.constant 0 : i32
    %c0_i32_2 = arith.constant 0 : i32
    return %c0_i32, %c0_i32_0, %c0_i32_1 : i32, i32, i32
  }
  func.func @transform_9(%arg0: i32, %arg1: i32) -> (i32, i32, i32) {
    %c0_i32 = arith.constant 0 : i32
    %c0_i32_0 = arith.constant 0 : i32
    %c0_i32_1 = arith.constant 0 : i32
    %c0_i32_2 = arith.constant 0 : i32
    return %c0_i32, %c0_i32_0, %c0_i32_1 : i32, i32, i32
  }
  func.func @transform_10(%arg0: i32, %arg1: i32) -> (i32, i32, i32) {
    %c0_i32 = arith.constant 0 : i32
    %c0_i32_0 = arith.constant 0 : i32
    %c0_i32_1 = arith.constant 0 : i32
    %c0_i32_2 = arith.constant 0 : i32
    return %c0_i32, %c0_i32_0, %c0_i32_1 : i32, i32, i32
  }
  func.func @transform_11(%arg0: i32, %arg1: i32) -> (i32, i32, i32) {
    %c0_i32 = arith.constant 0 : i32
    %c0_i32_0 = arith.constant 0 : i32
    %c0_i32_1 = arith.constant 0 : i32
    %c0_i32_2 = arith.constant 0 : i32
    return %c0_i32, %c0_i32_0, %c0_i32_1 : i32, i32, i32
  }
  func.func @transform_12(%arg0: i32, %arg1: i32) -> (i32, i32) {
    %c0_i32 = arith.constant 0 : i32
    %c0_i32_0 = arith.constant 0 : i32
    %c0_i32_1 = arith.constant 0 : i32
    return %c0_i32, %c0_i32_0 : i32, i32
  }
  func.func @transform_13(%arg0: i32, %arg1: i32) -> (i32, i32) {
    %c0_i32 = arith.constant 0 : i32
    %c0_i32_0 = arith.constant 0 : i32
    %c0_i32_1 = arith.constant 0 : i32
    return %c0_i32, %c0_i32_0 : i32, i32
  }
  func.func @transform_14(%arg0: i32, %arg1: i32) -> (i32, i32, i32) {
    %c0_i32 = arith.constant 0 : i32
    %c0_i32_0 = arith.constant 0 : i32
    return %arg0, %arg1, %c0_i32 : i32, i32, i32
  }
  func.func @transform_15(%arg0: i32, %arg1: i32) -> (i32, i32, i32, i32) {
    %c0_i32 = arith.constant 0 : i32
    %c0_i32_0 = arith.constant 0 : i32
    %c0_i32_1 = arith.constant 0 : i32
    return %arg0, %arg1, %c0_i32, %c0_i32_0 : i32, i32, i32, i32
  }
  func.func @transform_16(%arg0: i32, %arg1: i32) -> (i32, i32, i32) {
    %c0_i32 = arith.constant 0 : i32
    %c0_i32_0 = arith.constant 0 : i32
    %c0_i32_1 = arith.constant 0 : i32
    return %arg0, %c0_i32, %c0_i32_0 : i32, i32, i32
  }
}

</mosaic_0001>

<llo_original>
// kernel: tpu_custom_call.1
$region0: #{tpu_custom_call.1}
  #allocation0 [shape = 'u32[]', space=smem, size = 0x4, offset = 0x4, fixed_abs, tag = 'smem constant byte address 0x4 - core index']
  #allocation1 [shape = 'u32[72,128]{1,0:T(1,128)}', space=vmem, size = 0x9000, scoped, tag = 'internal scratch']
  #allocation2 [shape = 'f32[2,8,32]{2,1,0:T(8,128)}', space=vmem, size = 0x2000, scoped, tag = 'scratch operand']
  %s0 = inlined_call_operand.vmem [shape: f32[2,8,32], index: 0, kind: input, shape index: {}]
  %s1 = inlined_call_operand.hbm [shape: f32[2,8,8,16], index: 1, kind: input, shape index: {}]
  %s2 = inlined_call_operand.vmem [shape: f32[2,8,1], index: 2, kind: input, shape index: {}]
  %s3 = inlined_call_operand.vmem [shape: f32[2,1,8], index: 3, kind: input, shape index: {}]
  %s4 = inlined_call_operand.vmem [shape: f32[2,1,32], index: 4, kind: input, shape index: {}]
  %s5 = inlined_call_operand.vmem [shape: f32[2,1,32], index: 5, kind: input, shape index: {}]
  %s6 = inlined_call_operand.vmem [shape: f32[2,32,16], index: 6, kind: input, shape index: {}]
  %s7 = inlined_call_operand.hbm [shape: f32[2,1,16], index: 7, kind: input, shape index: {}]
  %s8 = inlined_call_operand.vmem [shape: f32[3,32,32], index: 8, kind: input, shape index: {}]
  %s9 = inlined_call_operand.vmem [shape: f32[3,1,32], index: 9, kind: input, shape index: {}]
  %s10 = inlined_call_operand.hbm [shape: f32[2,16,32], index: 10, kind: input, shape index: {}]
  %s11 = inlined_call_operand.vmem [shape: f32[2,1,32], index: 11, kind: input, shape index: {}]
  %s12 = inlined_call_operand.hbm [shape: f32[32,32], index: 12, kind: input, shape index: {}]
  %s13 = inlined_call_operand.vmem [shape: f32[1,32], index: 13, kind: input, shape index: {}]
  %s14 = inlined_call_operand.hbm [shape: f32[2,8,32], index: 14, kind: output, shape index: {0}]
  %s15 = inlined_call_operand.hbm [shape: f32[2,8,8,16], index: 15, kind: output, shape index: {1}]
  %s16 = inlined_call_operand.hbm [shape: f32[2,4,16], index: 16, kind: output, shape index: {2}]
  %17 = xla_tuple %s14, %s15, %s16
  %s18 = sld [smem:[#allocation0]]
  $region133: #{tpu_custom_call.1} parent=0
    _
  %s20 = ssub.s32 1, %s18
  %s21 = scalar_select 0, %s20, %s18
  $region1: #{tpu_custom_call.1} parent=0
    #allocation3 [shape = 'u8[65536]{0}', space=vmem, size = 0x10000, scoped, tag = 'input window, operand 1']
    #allocation4 [shape = 's32[2]{0}', space=sflag, size = 0x8, scoped, tag = 'scoped memory for tpu_custom_call.1']
    #allocation5 [shape = 's32[2]{0}', space=sflag, size = 0x8, scoped, tag = 'scoped memory for tpu_custom_call.1']
    #allocation6 [shape = 'u8[1024]{0}', space=vmem, size = 0x400, scoped, tag = 'input window, operand 7']
    #allocation7 [shape = 's32[2]{0}', space=sflag, size = 0x8, scoped, tag = 'scoped memory for tpu_custom_call.1']
    #allocation8 [shape = 'u8[16384]{0}', space=vmem, size = 0x4000, scoped, tag = 'input window, operand 10, single buffered']
    #allocation9 [shape = 'u8[16384]{0}', space=vmem, size = 0x4000, scoped, tag = 'input window, operand 12, single buffered']
    #allocation10 [shape = 's32[1]{0}', space=sflag, size = 0x4, scoped, tag = 'scoped memory for tpu_custom_call.1']
    #allocation11 [shape = 'u8[8192]{0}', space=vmem, size = 0x2000, scoped, tag = 'output window, operand 0']
    #allocation12 [shape = 'u8[65536]{0}', space=vmem, size = 0x10000, scoped, tag = 'output window, operand 1']
    #allocation13 [shape = 's32[2]{0}', space=sflag, size = 0x8, scoped, tag = 'scoped memory for tpu_custom_call.1']
    #allocation14 [shape = 'u8[4096]{0}', space=vmem, size = 0x1000, scoped, tag = 'output window, operand 2']
    %22 = vsyncpa [#allocation4], 0
    %s23 = scalar_lea.sflag [#allocation4], 1
    %24 = vsyncpa %s23, 0
    %25 = vsyncpa [#allocation7], 0
    %s26 = scalar_lea.sflag [#allocation7], 1
    %27 = vsyncpa %s26, 0
    %28 = vsyncpa [#allocation10], 0
    %29 = vsyncpa [#allocation5], 0
    %s30 = scalar_lea.sflag [#allocation5], 1
    %31 = vsyncpa %s30, 0
    %32 = vsyncpa [#allocation13], 0
    %s33 = scalar_lea.sflag [#allocation13], 1
    %34 = vsyncpa %s33, 0
    loop: start=0, step=1, limit=4
    $region2: #{tpu_custom_call.1} parent=1 // loop_pre_header
      _
    $region3: #{tpu_custom_call.1} parent=1 // loop_header
      %s36 = sphi 0, %s40
      %p37 = scmp.ge.s32.totalorder %s36, 4
      %s43 = sphi 0, %s55
      %s44 = sphi 0, %s51
      %s45 = sphi 0, %s43
      %s46 = sphi 0, %s44
      %s47 = sphi 0, %s45
      %s48 = sphi 0, %s46
      %s58 = sphi 0, %s60
      %s61 = sphi 0, %s58
      %s62 = sphi 0, %s61
      %s78 = sphi 0, %s62
      %s86 = sphi 0, %s88
      %s89 = sphi 0, %s86
      %s90 = sphi 0, %s89
      %s106 = sphi 0, %s90
      %s112 = sphi 0, %s114
      %s115 = sphi 0, %s112
      %s116 = sphi 0, %s115
      %s132 = sphi 0, %s116
      %s138 = sphi 0, %s140
      %s141 = sphi 0, %s138
      %s142 = sphi 0, %s141
      %s158 = sphi 0, %s142
      %s164 = sphi 0, %s166
      %s167 = sphi 0, %s164
      %s168 = sphi 0, %s167
      %s184 = sphi 0, %s168
      %s190 = sphi 0, %s192
      %s193 = sphi 0, %s190
      %s194 = sphi 0, %s193
      %s210 = sphi 0, %s194
      %s216 = sphi 0, %s218
      %s219 = sphi 0, %s216
      %s220 = sphi 0, %s219
      %s236 = sphi 0, %s220
      %s242 = sphi 0, %s244
      %s245 = sphi 0, %s242
      %s246 = sphi 0, %s245
      %s262 = sphi 0, %s246
      %s266 = sphi 0, %s266
      %s268 = sphi 0, %s266
      %s269 = sphi 0, %s268
      %s283 = sphi 0, %s269
      %s287 = sphi 0, %s287
      %s289 = sphi 0, %s287
      %s290 = sphi 0, %s289
      %s304 = sphi 0, %s290
      %s308 = sphi 0, %s308
      %s310 = sphi 0, %s308
      %s311 = sphi 0, %s310
      %s325 = sphi 0, %s311
      %s329 = sphi 0, %s329
      %s331 = sphi 0, %s329
      %s332 = sphi 0, %s331
      %s346 = sphi 0, %s332
      %s350 = sphi 0, %s350
      %s352 = sphi 0, %s350
      %s353 = sphi 0, %s352
      %s367 = sphi 0, %s353
      %s371 = sphi 0, %s371
      %s373 = sphi 0, %s371
      %s374 = sphi 0, %s373
      %s388 = sphi 0, %s374
      %s396 = sphi 0, %s398
      %s399 = sphi 0, %s396
      %s400 = sphi 0, %s399
      %s416 = sphi 0, %s400
      %s424 = sphi 0, %s426
      %s427 = sphi 0, %s424
      %s428 = sphi 0, %s427
      %s444 = sphi 0, %s428
      %s450 = sphi 0, %s452
      %s453 = sphi 0, %s450
      %s454 = sphi 0, %s453
      %s470 = sphi 0, %s454
    $region4: #{tpu_custom_call.1} parent=1 // loop_header_branch
      %39 = sbr.rel (%p37) target = $region8
    $region5: #{tpu_custom_call.1} parent=1 // loop_body
      %s41 = ssub.s32 %s36, 1
      %s42 = ssub.s32 %s36, 2
      %s49 = sadd.s32 1, %s44
      %p50 = scmp.ge.s32.totalorder %s49, 1
      %s51 = scalar_select %p50, 0, %s49
      %s52 = sadd.s32 1, %s43
      %s53 = scalar_select %p50, %s52, %s43
      %p54 = scmp.ge.s32.totalorder %s53, 2
      %s55 = scalar_select %p54, 0, %s53
      %s56 = ssub.s32 %s43, %s55
      %p57 = scmp.eq.s32.totalorder %s56, 0
      %s59 = sadd.s32 %s58, 1
      %s60 = scalar_select %p57, %s58, %s59
      %p63 = pneg %p57
      %p64 = scmp.eq.s32.totalorder %s36, 1
      %p65 = por %p63, %p64
      %p66 = scmp.ne.s32.totalorder %s58, %s61
      %p67 = scmp.eq.s32.totalorder %s36, 0
      %p68 = por %p66, %p67
      %p69 = scmp.ne.s32.totalorder %s58, %s61
      %p70 = scmp.eq.s32.totalorder %s41, 1
      %p71 = por %p69, %p70
      %p72 = scmp.ne.s32.totalorder %s61, %s62
      %p73 = scmp.eq.s32.totalorder %s41, 0
      %p74 = por %p72, %p73
      %p75 = scmp.ne.s32.totalorder %s61, %s62
      %p76 = scmp.eq.s32.totalorder %s42, 1
      %p77 = por %p75, %p76
      %p79 = scmp.ne.s32.totalorder %s62, %s78
      %p80 = scmp.eq.s32.totalorder %s42, 0
      %p81 = por %p79, %p80
      %s82 = ssub.s32 %s43, %s55
      %s83 = ssub.s32 %s44, %s51
      %s84 = sor.u32 %s82, %s83
      %p85 = scmp.eq.s32.totalorder %s84, 0
      %s87 = sadd.s32 %s86, 1
      %s88 = scalar_select %p85, %s86, %s87
      %p91 = pneg %p85
      %p92 = scmp.eq.s32.totalorder %s36, 1
      %p93 = por %p91, %p92
      %p94 = scmp.ne.s32.totalorder %s86, %s89
      %p95 = scmp.eq.s32.totalorder %s36, 0
      %p96 = por %p94, %p95
      %p97 = scmp.ne.s32.totalorder %s86, %s89
      %p98 = scmp.eq.s32.totalorder %s41, 1
      %p99 = por %p97, %p98
      %p100 = scmp.ne.s32.totalorder %s89, %s90
      %p101 = scmp.eq.s32.totalorder %s41, 0
      %p102 = por %p100, %p101
      %p103 = scmp.ne.s32.totalorder %s89, %s90
      %p104 = scmp.eq.s32.totalorder %s42, 1
      %p105 = por %p103, %p104
      %p107 = scmp.ne.s32.totalorder %s90, %s106
      %p108 = scmp.eq.s32.totalorder %s42, 0
      %p109 = por %p107, %p108
      %s110 = ssub.s32 %s43, %s55
      %p111 = scmp.eq.s32.totalorder %s110, 0
      %s113 = sadd.s32 %s112, 1
      %s114 = scalar_select %p111, %s112, %s113
      %p117 = pneg %p111
      %p118 = scmp.eq.s32.totalorder %s36, 1
      %p119 = por %p117, %p118
      %p120 = scmp.ne.s32.totalorder %s112, %s115
      %p121 = scmp.eq.s32.totalorder %s36, 0
      %p122 = por %p120, %p121
      %p123 = scmp.ne.s32.totalorder %s112, %s115
      %p124 = scmp.eq.s32.totalorder %s41, 1
      %p125 = por %p123, %p124
      %p126 = scmp.ne.s32.totalorder %s115, %s116
      %p127 = scmp.eq.s32.totalorder %s41, 0
      %p128 = por %p126, %p127
      %p129 = scmp.ne.s32.totalorder %s115, %s116
      %p130 = scmp.eq.s32.totalorder %s42, 1
      %p131 = por %p129, %p130
      %p133 = scmp.ne.s32.totalorder %s116, %s132
      %p134 = scmp.eq.s32.totalorder %s42, 0
      %p135 = por %p133, %p134
      %s136 = ssub.s32 %s43, %s55
      %p137 = scmp.eq.s32.totalorder %s136, 0
      %s139 = sadd.s32 %s138, 1
      %s140 = scalar_select %p137, %s138, %s139
      %p143 = pneg %p137
      %p144 = scmp.eq.s32.totalorder %s36, 1
      %p145 = por %p143, %p144
      %p146 = scmp.ne.s32.totalorder %s138, %s141
      %p147 = scmp.eq.s32.totalorder %s36, 0
      %p148 = por %p146, %p147
      %p149 = scmp.ne.s32.totalorder %s138, %s141
      %p150 = scmp.eq.s32.totalorder %s41, 1
      %p151 = por %p149, %p150
      %p152 = scmp.ne.s32.totalorder %s141, %s142
      %p153 = scmp.eq.s32.totalorder %s41, 0
      %p154 = por %p152, %p153
      %p155 = scmp.ne.s32.totalorder %s141, %s142
      %p156 = scmp.eq.s32.totalorder %s42, 1
      %p157 = por %p155, %p156
      %p159 = scmp.ne.s32.totalorder %s142, %s158
      %p160 = scmp.eq.s32.totalorder %s42, 0
      %p161 = por %p159, %p160
      %s162 = ssub.s32 %s43, %s55
      %p163 = scmp.eq.s32.totalorder %s162, 0
      %s165 = sadd.s32 %s164, 1
      %s166 = scalar_select %p163, %s164, %s165
      %p169 = pneg %p163
      %p170 = scmp.eq.s32.totalorder %s36, 1
      %p171 = por %p169, %p170
      %p172 = scmp.ne.s32.totalorder %s164, %s167
      %p173 = scmp.eq.s32.totalorder %s36, 0
      %p174 = por %p172, %p173
      %p175 = scmp.ne.s32.totalorder %s164, %s167
      %p176 = scmp.eq.s32.totalorder %s41, 1
      %p177 = por %p175, %p176
      %p178 = scmp.ne.s32.totalorder %s167, %s168
      %p179 = scmp.eq.s32.totalorder %s41, 0
      %p180 = por %p178, %p179
      %p181 = scmp.ne.s32.totalorder %s167, %s168
      %p182 = scmp.eq.s32.totalorder %s42, 1
      %p183 = por %p181, %p182
      %p185 = scmp.ne.s32.totalorder %s168, %s184
      %p186 = scmp.eq.s32.totalorder %s42, 0
      %p187 = por %p185, %p186
      %s188 = ssub.s32 %s43, %s55
      %p189 = scmp.eq.s32.totalorder %s188, 0
      %s191 = sadd.s32 %s190, 1
      %s192 = scalar_select %p189, %s190, %s191
      %p195 = pneg %p189
      %p196 = scmp.eq.s32.totalorder %s36, 1
      %p197 = por %p195, %p196
      %p198 = scmp.ne.s32.totalorder %s190, %s193
      %p199 = scmp.eq.s32.totalorder %s36, 0
      %p200 = por %p198, %p199
      %p201 = scmp.ne.s32.totalorder %s190, %s193
      %p202 = scmp.eq.s32.totalorder %s41, 1
      %p203 = por %p201, %p202
      %p204 = scmp.ne.s32.totalorder %s193, %s194
      %p205 = scmp.eq.s32.totalorder %s41, 0
      %p206 = por %p204, %p205
      %p207 = scmp.ne.s32.totalorder %s193, %s194
      %p208 = scmp.eq.s32.totalorder %s42, 1
      %p209 = por %p207, %p208
      %p211 = scmp.ne.s32.totalorder %s194, %s210
      %p212 = scmp.eq.s32.totalorder %s42, 0
      %p213 = por %p211, %p212
      %s214 = ssub.s32 %s43, %s55
      %p215 = scmp.eq.s32.totalorder %s214, 0
      %s217 = sadd.s32 %s216, 1
      %s218 = scalar_select %p215, %s216, %s217
      %p221 = pneg %p215
      %p222 = scmp.eq.s32.totalorder %s36, 1
      %p223 = por %p221, %p222
      %p224 = scmp.ne.s32.totalorder %s216, %s219
      %p225 = scmp.eq.s32.totalorder %s36, 0
      %p226 = por %p224, %p225
      %p227 = scmp.ne.s32.totalorder %s216, %s219
      %p228 = scmp.eq.s32.totalorder %s41, 1
      %p229 = por %p227, %p228
      %p230 = scmp.ne.s32.totalorder %s219, %s220
      %p231 = scmp.eq.s32.totalorder %s41, 0
      %p232 = por %p230, %p231
      %p233 = scmp.ne.s32.totalorder %s219, %s220
      %p234 = scmp.eq.s32.totalorder %s42, 1
      %p235 = por %p233, %p234
      %p237 = scmp.ne.s32.totalorder %s220, %s236
      %p238 = scmp.eq.s32.totalorder %s42, 0
      %p239 = por %p237, %p238
      %s240 = ssub.s32 %s43, %s55
      %p241 = scmp.eq.s32.totalorder %s240, 0
      %s243 = sadd.s32 %s242, 1
      %s244 = scalar_select %p241, %s242, %s243
      %p247 = pneg %p241
      %p248 = scmp.eq.s32.totalorder %s36, 1
      %p249 = por %p247, %p248
      %p250 = scmp.ne.s32.totalorder %s242, %s245
      %p251 = scmp.eq.s32.totalorder %s36, 0
      %p252 = por %p250, %p251
      %p253 = scmp.ne.s32.totalorder %s242, %s245
      %p254 = scmp.eq.s32.totalorder %s41, 1
      %p255 = por %p253, %p254
      %p256 = scmp.ne.s32.totalorder %s245, %s246
      %p257 = scmp.eq.s32.totalorder %s41, 0
      %p258 = por %p256, %p257
      %p259 = scmp.ne.s32.totalorder %s245, %s246
      %p260 = scmp.eq.s32.totalorder %s42, 1
      %p261 = por %p259, %p260
      %p263 = scmp.ne.s32.totalorder %s246, %s262
      %p264 = scmp.eq.s32.totalorder %s42, 0
      %p265 = por %p263, %p264
      %s267 = sadd.s32 %s266, 1
      %p270 = scmp.eq.s32.totalorder %s36, 1
      %p271 = scmp.ne.s32.totalorder %s266, %s268
      %p272 = scmp.eq.s32.totalorder %s36, 0
      %p273 = por %p271, %p272
      %p274 = scmp.ne.s32.totalorder %s266, %s268
      %p275 = scmp.eq.s32.totalorder %s41, 1
      %p276 = por %p274, %p275
      %p277 = scmp.ne.s32.totalorder %s268, %s269
      %p278 = scmp.eq.s32.totalorder %s41, 0
      %p279 = por %p277, %p278
      %p280 = scmp.ne.s32.totalorder %s268, %s269
      %p281 = scmp.eq.s32.totalorder %s42, 1
      %p282 = por %p280, %p281
      %p284 = scmp.ne.s32.totalorder %s269, %s283
      %p285 = scmp.eq.s32.totalorder %s42, 0
      %p286 = por %p284, %p285
      %s288 = sadd.s32 %s287, 1
      %p291 = scmp.eq.s32.totalorder %s36, 1
      %p292 = scmp.ne.s32.totalorder %s287, %s289
      %p293 = scmp.eq.s32.totalorder %s36, 0
      %p294 = por %p292, %p293
      %p295 = scmp.ne.s32.totalorder %s287, %s289
      %p296 = scmp.eq.s32.totalorder %s41, 1
      %p297 = por %p295, %p296
      %p298 = scmp.ne.s32.totalorder %s289, %s290
      %p299 = scmp.eq.s32.totalorder %s41, 0
      %p300 = por %p298, %p299
      %p301 = scmp.ne.s32.totalorder %s289, %s290
      %p302 = scmp.eq.s32.totalorder %s42, 1
      %p303 = por %p301, %p302
      %p305 = scmp.ne.s32.totalorder %s290, %s304
      %p306 = scmp.eq.s32.totalorder %s42, 0
      %p307 = por %p305, %p306
      %s309 = sadd.s32 %s308, 1
      %p312 = scmp.eq.s32.totalorder %s36, 1
      %p313 = scmp.ne.s32.totalorder %s308, %s310
      %p314 = scmp.eq.s32.totalorder %s36, 0
      %p315 = por %p313, %p314
      %p316 = scmp.ne.s32.totalorder %s308, %s310
      %p317 = scmp.eq.s32.totalorder %s41, 1
      %p318 = por %p316, %p317
      %p319 = scmp.ne.s32.totalorder %s310, %s311
      %p320 = scmp.eq.s32.totalorder %s41, 0
      %p321 = por %p319, %p320
      %p322 = scmp.ne.s32.totalorder %s310, %s311
      %p323 = scmp.eq.s32.totalorder %s42, 1
      %p324 = por %p322, %p323
      %p326 = scmp.ne.s32.totalorder %s311, %s325
      %p327 = scmp.eq.s32.totalorder %s42, 0
      %p328 = por %p326, %p327
      %s330 = sadd.s32 %s329, 1
      %p333 = scmp.eq.s32.totalorder %s36, 1
      %p334 = scmp.ne.s32.totalorder %s329, %s331
      %p335 = scmp.eq.s32.totalorder %s36, 0
      %p336 = por %p334, %p335
      %p337 = scmp.ne.s32.totalorder %s329, %s331
      %p338 = scmp.eq.s32.totalorder %s41, 1
      %p339 = por %p337, %p338
      %p340 = scmp.ne.s32.totalorder %s331, %s332
      %p341 = scmp.eq.s32.totalorder %s41, 0
      %p342 = por %p340, %p341
      %p343 = scmp.ne.s32.totalorder %s331, %s332
      %p344 = scmp.eq.s32.totalorder %s42, 1
      %p345 = por %p343, %p344
      %p347 = scmp.ne.s32.totalorder %s332, %s346
      %p348 = scmp.eq.s32.totalorder %s42, 0
      %p349 = por %p347, %p348
      %s351 = sadd.s32 %s350, 1
      %p354 = scmp.eq.s32.totalorder %s36, 1
      %p355 = scmp.ne.s32.totalorder %s350, %s352
      %p356 = scmp.eq.s32.totalorder %s36, 0
      %p357 = por %p355, %p356
      %p358 = scmp.ne.s32.totalorder %s350, %s352
      %p359 = scmp.eq.s32.totalorder %s41, 1
      %p360 = por %p358, %p359
      %p361 = scmp.ne.s32.totalorder %s352, %s353
      %p362 = scmp.eq.s32.totalorder %s41, 0
      %p363 = por %p361, %p362
      %p364 = scmp.ne.s32.totalorder %s352, %s353
      %p365 = scmp.eq.s32.totalorder %s42, 1
      %p366 = por %p364, %p365
      %p368 = scmp.ne.s32.totalorder %s353, %s367
      %p369 = scmp.eq.s32.totalorder %s42, 0
      %p370 = por %p368, %p369
      %s372 = sadd.s32 %s371, 1
      %p375 = scmp.eq.s32.totalorder %s36, 1
      %p376 = scmp.ne.s32.totalorder %s371, %s373
      %p377 = scmp.eq.s32.totalorder %s36, 0
      %p378 = por %p376, %p377
      %p379 = scmp.ne.s32.totalorder %s371, %s373
      %p380 = scmp.eq.s32.totalorder %s41, 1
      %p381 = por %p379, %p380
      %p382 = scmp.ne.s32.totalorder %s373, %s374
      %p383 = scmp.eq.s32.totalorder %s41, 0
      %p384 = por %p382, %p383
      %p385 = scmp.ne.s32.totalorder %s373, %s374
      %p386 = scmp.eq.s32.totalorder %s42, 1
      %p387 = por %p385, %p386
      %p389 = scmp.ne.s32.totalorder %s374, %s388
      %p390 = scmp.eq.s32.totalorder %s42, 0
      %p391 = por %p389, %p390
      %s392 = ssub.s32 %s43, %s55
      %s393 = ssub.s32 %s44, %s51
      %s394 = sor.u32 %s392, %s393
      %p395 = scmp.eq.s32.totalorder %s394, 0
      %s397 = sadd.s32 %s396, 1
      %s398 = scalar_select %p395, %s396, %s397
      %p401 = pneg %p395
      %p402 = scmp.eq.s32.totalorder %s36, 1
      %p403 = por %p401, %p402
      %p404 = scmp.ne.s32.totalorder %s396, %s399
      %p405 = scmp.eq.s32.totalorder %s36, 0
      %p406 = por %p404, %p405
      %p407 = scmp.ne.s32.totalorder %s396, %s399
      %p408 = scmp.eq.s32.totalorder %s41, 1
      %p409 = por %p407, %p408
      %p410 = scmp.ne.s32.totalorder %s399, %s400
      %p411 = scmp.eq.s32.totalorder %s41, 0
      %p412 = por %p410, %p411
      %p413 = scmp.ne.s32.totalorder %s399, %s400
      %p414 = scmp.eq.s32.totalorder %s42, 1
      %p415 = por %p413, %p414
      %p417 = scmp.ne.s32.totalorder %s400, %s416
      %p418 = scmp.eq.s32.totalorder %s42, 0
      %p419 = por %p417, %p418
      %s420 = ssub.s32 %s43, %s55
      %s421 = ssub.s32 %s44, %s51
      %s422 = sor.u32 %s420, %s421
      %p423 = scmp.eq.s32.totalorder %s422, 0
      %s425 = sadd.s32 %s424, 1
      %s426 = scalar_select %p423, %s424, %s425
      %p429 = pneg %p423
      %p430 = scmp.eq.s32.totalorder %s36, 1
      %p431 = por %p429, %p430
      %p432 = scmp.ne.s32.totalorder %s424, %s427
      %p433 = scmp.eq.s32.totalorder %s36, 0
      %p434 = por %p432, %p433
      %p435 = scmp.ne.s32.totalorder %s424, %s427
      %p436 = scmp.eq.s32.totalorder %s41, 1
      %p437 = por %p435, %p436
      %p438 = scmp.ne.s32.totalorder %s427, %s428
      %p439 = scmp.eq.s32.totalorder %s41, 0
      %p440 = por %p438, %p439
      %p441 = scmp.ne.s32.totalorder %s427, %s428
      %p442 = scmp.eq.s32.totalorder %s42, 1
      %p443 = por %p441, %p442
      %p445 = scmp.ne.s32.totalorder %s428, %s444
      %p446 = scmp.eq.s32.totalorder %s42, 0
      %p447 = por %p445, %p446
      %s448 = ssub.s32 %s43, %s55
      %p449 = scmp.eq.s32.totalorder %s448, 0
      %s451 = sadd.s32 %s450, 1
      %s452 = scalar_select %p449, %s450, %s451
      %p455 = pneg %p449
      %p456 = scmp.eq.s32.totalorder %s36, 1
      %p457 = por %p455, %p456
      %p458 = scmp.ne.s32.totalorder %s450, %s453
      %p459 = scmp.eq.s32.totalorder %s36, 0
      %p460 = por %p458, %p459
      %p461 = scmp.ne.s32.totalorder %s450, %s453
      %p462 = scmp.eq.s32.totalorder %s41, 1
      %p463 = por %p461, %p462
      %p464 = scmp.ne.s32.totalorder %s453, %s454
      %p465 = scmp.eq.s32.totalorder %s41, 0
      %p466 = por %p464, %p465
      %p467 = scmp.ne.s32.totalorder %s453, %s454
      %p468 = scmp.eq.s32.totalorder %s42, 1
      %p469 = por %p467, %p468
      %p471 = scmp.ne.s32.totalorder %s454, %s470
      %p472 = scmp.eq.s32.totalorder %s42, 0
      %p473 = por %p471, %p472
      %p474 = scmp.le.s32.totalorder 1, %s36
      %p475 = scmp.lt.s32.totalorder %s36, 3
      %p476 = pnand %p474, %p475
      %p477 = pneg %p476
      // Predicated region
      $region9: #{tpu_custom_call.1} parent=5 // pred_check
        _
      $region10: #{tpu_custom_call.1} parent=5 // pred_check_branch
        %479 = sbr.rel (%p476) target = $region12
      $region11: #{tpu_custom_call.1} parent=5 // pred_region
        %s480 = ssub.s32 %s36, 1
        // Predicated region
        $region13: #{tpu_custom_call.1} parent=11 // pred_check
          %p481 = pneg %p279
        $region14: #{tpu_custom_call.1} parent=11 // pred_check_branch
          %483 = sbr.rel (%p481) target = $region16
        $region15: #{tpu_custom_call.1} parent=11 // pred_region
          _
        $region16: #{tpu_custom_call.1} parent=11 // pred_fallthru
          _
        // Predicated region
        $region17: #{tpu_custom_call.1} parent=11 // pred_check
          %p484 = pneg %p300
        $region18: #{tpu_custom_call.1} parent=11 // pred_check_branch
          %486 = sbr.rel (%p484) target = $region20
        $region19: #{tpu_custom_call.1} parent=11 // pred_region
          _
        $region20: #{tpu_custom_call.1} parent=11 // pred_fallthru
          _
        // Predicated region
        $region21: #{tpu_custom_call.1} parent=11 // pred_check
          %p487 = pneg %p321
        $region22: #{tpu_custom_call.1} parent=11 // pred_check_branch
          %489 = sbr.rel (%p487) target = $region24
        $region23: #{tpu_custom_call.1} parent=11 // pred_region
          %491 = vsyncadd [#allocation7], 0
          %s492 = sshll.u32 %s10, 4
          %s493 = int_to_ptr.hbm [resolvable:$true] %s492
          %s494 = sshll.u32 [#allocation8], 4
          %s495 = int_to_ptr.vmem [resolvable:$true] %s494
          %500 = dma.hbm_to_vmem [thread:$0]  %s493, 512, %s495, [#allocation7], 128, 128, 8
        $region24: #{tpu_custom_call.1} parent=11 // pred_fallthru
          _
        // Predicated region
        $region25: #{tpu_custom_call.1} parent=11 // pred_check
          %p501 = pneg %p342
        $region26: #{tpu_custom_call.1} parent=11 // pred_check_branch
          %503 = sbr.rel (%p501) target = $region28
        $region27: #{tpu_custom_call.1} parent=11 // pred_region
          _
        $region28: #{tpu_custom_call.1} parent=11 // pred_fallthru
          _
        // Predicated region
        $region29: #{tpu_custom_call.1} parent=11 // pred_check
          %p504 = pneg %p363
        $region30: #{tpu_custom_call.1} parent=11 // pred_check_branch
          %506 = sbr.rel (%p504) target = $region32
        $region31: #{tpu_custom_call.1} parent=11 // pred_region
          %508 = vsyncadd [#allocation10], 0
          %s509 = sshll.u32 %s12, 4
          %s510 = int_to_ptr.hbm [resolvable:$true] %s509
          %s511 = sshll.u32 [#allocation9], 4
          %s512 = int_to_ptr.vmem [resolvable:$true] %s511
          %517 = dma.hbm_to_vmem [thread:$0]  %s510, 512, %s512, [#allocation10], 128, 128, 8
        $region32: #{tpu_custom_call.1} parent=11 // pred_fallthru
          _
        // Predicated region
        $region33: #{tpu_custom_call.1} parent=11 // pred_check
          %p518 = pneg %p384
        $region34: #{tpu_custom_call.1} parent=11 // pred_check_branch
          %520 = sbr.rel (%p518) target = $region36
        $region35: #{tpu_custom_call.1} parent=11 // pred_region
          _
        $region36: #{tpu_custom_call.1} parent=11 // pred_fallthru
          _
      $region12: #{tpu_custom_call.1} parent=5 // pred_fallthru
        _
      %p521 = scmp.lt.s32.totalorder %s36, 2
      // Predicated region
      $region37: #{tpu_custom_call.1} parent=5 // pred_check
        %p522 = pneg %p521
      $region38: #{tpu_custom_call.1} parent=5 // pred_check_branch
        %524 = sbr.rel (%p522) target = $region40
      $region39: #{tpu_custom_call.1} parent=5 // pred_region
        // Predicated region
        $region41: #{tpu_custom_call.1} parent=39 // pred_check
          %p525 = pneg %p68
        $region42: #{tpu_custom_call.1} parent=39 // pred_check_branch
          %527 = sbr.rel (%p525) target = $region44
        $region43: #{tpu_custom_call.1} parent=39 // pred_region
          %p528 = scmp.lt.s32.totalorder %s43, 1
          %s529 = scalar_select %p528, %s43, 1
          %s530 = smul.addr %s529, 8
          %s531 = scalar_lea.vmem %s0, %s530
        $region44: #{tpu_custom_call.1} parent=39 // pred_fallthru
          _
        // Predicated region
        $region45: #{tpu_custom_call.1} parent=39 // pred_check
          %p532 = pneg %p96
        $region46: #{tpu_custom_call.1} parent=39 // pred_check_branch
          %534 = sbr.rel (%p532) target = $region48
        $region47: #{tpu_custom_call.1} parent=39 // pred_region
          %s535 = sand.u32 %s86, 1
          %s536 = scalar_lea.sflag [#allocation4], %s535
          %s537 = sand.u32 %s86, 1
          %s538 = smul.addr %s537, 64
          %s539 = scalar_lea.vmem [#allocation3], %s538
          %s540 = smul.u32 8, %s44
          %542 = vsyncadd %s536, 0
          %s543 = smul.addr %s43, 8
          %s544 = sadd.s32 %s540, %s543
          %s545 = smul.addr %s544, 8
          %s546 = scalar_lea.hbm %s1, %s545
          %s547 = sshll.u32 %s546, 4
          %s548 = int_to_ptr.hbm [resolvable:$true] %s547
          %s549 = sshll.u32 %s539, 4
          %s550 = int_to_ptr.vmem [resolvable:$true] %s549
          %555 = dma.hbm_to_vmem [thread:$0]  %s548, 1024, %s550, %s536, 128, 128, 8
        $region48: #{tpu_custom_call.1} parent=39 // pred_fallthru
          _
        // Predicated region
        $region49: #{tpu_custom_call.1} parent=39 // pred_check
          %p556 = pneg %p122
        $region50: #{tpu_custom_call.1} parent=39 // pred_check_branch
          %558 = sbr.rel (%p556) target = $region52
        $region51: #{tpu_custom_call.1} parent=39 // pred_region
          %p559 = scmp.lt.s32.totalorder %s43, 1
          %s560 = scalar_select %p559, %s43, 1
          %s561 = smul.addr %s560, 8
          %s562 = scalar_lea.vmem %s2, %s561
        $region52: #{tpu_custom_call.1} parent=39 // pred_fallthru
          _
        // Predicated region
        $region53: #{tpu_custom_call.1} parent=39 // pred_check
          %p563 = pneg %p148
        $region54: #{tpu_custom_call.1} parent=39 // pred_check_branch
          %565 = sbr.rel (%p563) target = $region56
        $region55: #{tpu_custom_call.1} parent=39 // pred_region
          %p566 = scmp.lt.s32.totalorder %s43, 1
          %s567 = scalar_select %p566, %s43, 1
          %s568 = scalar_lea.vmem %s3, %s567
        $region56: #{tpu_custom_call.1} parent=39 // pred_fallthru
          _
        // Predicated region
        $region57: #{tpu_custom_call.1} parent=39 // pred_check
          %p569 = pneg %p174
        $region58: #{tpu_custom_call.1} parent=39 // pred_check_branch
          %571 = sbr.rel (%p569) target = $region60
        $region59: #{tpu_custom_call.1} parent=39 // pred_region
          %p572 = scmp.lt.s32.totalorder %s43, 1
          %s573 = scalar_select %p572, %s43, 1
          %s574 = scalar_lea.vmem %s4, %s573
        $region60: #{tpu_custom_call.1} parent=39 // pred_fallthru
          _
        // Predicated region
        $region61: #{tpu_custom_call.1} parent=39 // pred_check
          %p575 = pneg %p200
        $region62: #{tpu_custom_call.1} parent=39 // pred_check_branch
          %577 = sbr.rel (%p575) target = $region64
        $region63: #{tpu_custom_call.1} parent=39 // pred_region
          %p578 = scmp.lt.s32.totalorder %s43, 1
          %s579 = scalar_select %p578, %s43, 1
          %s580 = scalar_lea.vmem %s5, %s579
        $region64: #{tpu_custom_call.1} parent=39 // pred_fallthru
          _
        // Predicated region
        $region65: #{tpu_custom_call.1} parent=39 // pred_check
          %p581 = pneg %p226
        $region66: #{tpu_custom_call.1} parent=39 // pred_check_branch
          %583 = sbr.rel (%p581) target = $region68
        $region67: #{tpu_custom_call.1} parent=39 // pred_region
          %p584 = scmp.lt.s32.totalorder %s43, 1
          %s585 = scalar_select %p584, %s43, 1
          %s586 = smul.addr %s585, 4
          %s587 = smul.addr %s586, 8
          %s588 = scalar_lea.vmem %s6, %s587
        $region68: #{tpu_custom_call.1} parent=39 // pred_fallthru
          _
        // Predicated region
        $region69: #{tpu_custom_call.1} parent=39 // pred_check
          %p589 = pneg %p252
        $region70: #{tpu_custom_call.1} parent=39 // pred_check_branch
          %591 = sbr.rel (%p589) target = $region72
        $region71: #{tpu_custom_call.1} parent=39 // pred_region
          %s592 = sand.u32 %s36, 1
          %s593 = scalar_lea.sflag [#allocation7], %s592
          %s594 = sand.u32 %s242, 1
          %s595 = scalar_lea.vmem [#allocation6], %s594
          %597 = vsyncadd %s593, 0
          %s598 = scalar_lea.hbm %s7, %s43
          %s600 = sshll.u32 %s598, 4
          %s601 = int_to_ptr.hbm [resolvable:$true] %s600
          %s602 = sshll.u32 %s595, 4
          %s603 = int_to_ptr.vmem [resolvable:$true] %s602
          %605 = dma.hbm_to_vmem [thread:$0]  %s601, 16, %s603, %s593
        $region72: #{tpu_custom_call.1} parent=39 // pred_fallthru
          _
      $region40: #{tpu_custom_call.1} parent=5 // pred_fallthru
        _
      %p606 = scmp.le.s32.totalorder 1, %s36
      %p607 = scmp.lt.s32.totalorder %s36, 3
      %p608 = pnand %p606, %p607
      %p609 = pneg %p608
      // Predicated region
      $region73: #{tpu_custom_call.1} parent=5 // pred_check
        _
      $region74: #{tpu_custom_call.1} parent=5 // pred_check_branch
        %611 = sbr.rel (%p608) target = $region76
      $region75: #{tpu_custom_call.1} parent=5 // pred_region
        %s612 = ssub.s32 %s36, 1
        %s613 = sand.u32 %s89, 1
        %s614 = scalar_lea.sflag [#allocation4], %s613
        %s615 = sand.u32 %s89, 1
        %s616 = smul.addr %s615, 64
        %s617 = scalar_lea.vmem [#allocation3], %s616
        // Predicated region
        $region77: #{tpu_custom_call.1} parent=75 // pred_check
          %p618 = pneg %p102
        $region78: #{tpu_custom_call.1} parent=75 // pred_check_branch
          %620 = sbr.rel (%p618) target = $region80
        $region79: #{tpu_custom_call.1} parent=75 // pred_region
          %622 = dma.done %s614, 1024
        $region80: #{tpu_custom_call.1} parent=75 // pred_fallthru
          _
        %s623 = sand.u32 %s41, 1
        %s624 = scalar_lea.sflag [#allocation7], %s623
        %s625 = sand.u32 %s245, 1
        %s626 = scalar_lea.vmem [#allocation6], %s625
        // Predicated region
        $region81: #{tpu_custom_call.1} parent=75 // pred_check
          %p627 = pneg %p258
        $region82: #{tpu_custom_call.1} parent=75 // pred_check_branch
          %629 = sbr.rel (%p627) target = $region84
        $region83: #{tpu_custom_call.1} parent=75 // pred_region
          %631 = dma.done %s624, 16
        $region84: #{tpu_custom_call.1} parent=75 // pred_fallthru
          _
        // Predicated region
        $region85: #{tpu_custom_call.1} parent=75 // pred_check
          %p632 = pneg %p321
        $region86: #{tpu_custom_call.1} parent=75 // pred_check_branch
          %634 = sbr.rel (%p632) target = $region88
        $region87: #{tpu_custom_call.1} parent=75 // pred_region
          %636 = dma.done [#allocation7], 512
        $region88: #{tpu_custom_call.1} parent=75 // pred_fallthru
          _
        // Predicated region
        $region89: #{tpu_custom_call.1} parent=75 // pred_check
          %p637 = pneg %p363
        $region90: #{tpu_custom_call.1} parent=75 // pred_check_branch
          %639 = sbr.rel (%p637) target = $region92
        $region91: #{tpu_custom_call.1} parent=75 // pred_region
          %641 = dma.done [#allocation10], 512
        $region92: #{tpu_custom_call.1} parent=75 // pred_fallthru
          _
        %p642 = scmp.lt.s32.totalorder %s45, 1
        %s643 = scalar_select %p642, %s45, 1
        %s644 = smul.addr %s643, 8
        %s645 = scalar_lea.vmem %s0, %s644
        %p646 = pneg %p74
        %p647 = pneg %p71
        %s648 = sand.u32 %s89, 1
        %s649 = scalar_lea.sflag [#allocation4], %s648
        %s650 = sand.u32 %s89, 1
        %s651 = smul.addr %s650, 64
        %s652 = scalar_lea.vmem [#allocation3], %s651
        %p653 = pneg %p102
        %p654 = pneg %p99
        %p655 = scmp.lt.s32.totalorder %s45, 1
        %s656 = scalar_select %p655, %s45, 1
        %s657 = smul.addr %s656, 8
        %s658 = scalar_lea.vmem %s2, %s657
        %p659 = pneg %p128
        %p660 = pneg %p125
        %p661 = scmp.lt.s32.totalorder %s45, 1
        %s662 = scalar_select %p661, %s45, 1
        %s663 = scalar_lea.vmem %s3, %s662
        %p664 = pneg %p154
        %p665 = pneg %p151
        %p666 = scmp.lt.s32.totalorder %s45, 1
        %s667 = scalar_select %p666, %s45, 1
        %s668 = scalar_lea.vmem %s4, %s667
        %p669 = pneg %p180
        %p670 = pneg %p177
        %p671 = scmp.lt.s32.totalorder %s45, 1
        %s672 = scalar_select %p671, %s45, 1
        %s673 = scalar_lea.vmem %s5, %s672
        %p674 = pneg %p206
        %p675 = pneg %p203
        %p676 = scmp.lt.s32.totalorder %s45, 1
        %s677 = scalar_select %p676, %s45, 1
        %s678 = smul.addr %s677, 4
        %s679 = smul.addr %s678, 8
        %s680 = scalar_lea.vmem %s6, %s679
        %p681 = pneg %p232
        %p682 = pneg %p229
        %s683 = sand.u32 %s41, 1
        %s684 = scalar_lea.sflag [#allocation7], %s683
        %s685 = sand.u32 %s245, 1
        %s686 = scalar_lea.vmem [#allocation6], %s685
        %p687 = pneg %p258
        %p688 = pneg %p255
        %p689 = pneg %p279
        %p690 = pneg %p276
        %p691 = pneg %p300
        %p692 = pneg %p297
        %p693 = pneg %p321
        %p694 = pneg %p318
        %p695 = pneg %p342
        %p696 = pneg %p339
        %p697 = pneg %p363
        %p698 = pneg %p360
        %p699 = pneg %p384
        %p700 = pneg %p381
        %p701 = pneg %p412
        %p702 = pneg %p409
        %s703 = sand.u32 %s399, 1
        %s704 = scalar_lea.sflag [#allocation5], %s703
        %s705 = sand.u32 %s399, 1
        %s706 = smul.addr %s705, 8
        %s707 = scalar_lea.vmem [#allocation11], %s706
        %p708 = pneg %p440
        %p709 = pneg %p437
        %s710 = sand.u32 %s41, 1
        %s711 = scalar_lea.sflag [#allocation13], %s710
        %s712 = sand.u32 %s427, 1
        %s713 = smul.addr %s712, 64
        %s714 = scalar_lea.vmem [#allocation12], %s713
        %p715 = pneg %p466
        %p716 = pneg %p463
        %s717 = sand.u32 %s41, 1
        %s718 = scalar_lea.sflag [#allocation13], %s717
        %s719 = sand.u32 %s453, 1
        %s720 = smul.addr %s719, 4
        %s721 = scalar_lea.vmem [#allocation14], %s720
        %p722 = scmp.lt.s32.totalorder %s45, 1
        %s723 = scalar_select %p722, %s45, 1
        %s724 = smul.addr %s723, 8
        %s725 = scalar_lea.vmem %s0, %s724
        %s726 = smul.u32 8, %s46
        %p727 = scmp.lt.s32.totalorder %s45, 1
        %s728 = scalar_select %p727, %s45, 1
        %s729 = smul.addr %s728, 8
        %s730 = scalar_lea.vmem %s2, %s729
        %p731 = scmp.lt.s32.totalorder %s45, 1
        %s732 = scalar_select %p731, %s45, 1
        %s733 = scalar_lea.vmem %s3, %s732
        %p734 = scmp.lt.s32.totalorder %s45, 1
        %s735 = scalar_select %p734, %s45, 1
        %s736 = scalar_lea.vmem %s4, %s735
        %p737 = scmp.lt.s32.totalorder %s45, 1
        %s738 = scalar_select %p737, %s45, 1
        %s739 = scalar_lea.vmem %s5, %s738
        %p740 = scmp.lt.s32.totalorder %s45, 1
        %s741 = scalar_select %p740, %s45, 1
        %s742 = smul.addr %s741, 4
        %s743 = smul.addr %s742, 8
        %s744 = scalar_lea.vmem %s6, %s743
        %s745 = smul.u32 8, %s46
        %s746 = smul.u32 %s46, 8
        %v747 = vld [vmem:[%s617] sm:$0xff]
        %v748 = vld [vmem:[%s617 + $0x8] sm:$0xff]
        %v749 = vld [vmem:[%s617 + $0x10] sm:$0xff]
        %v750 = vld [vmem:[%s617 + $0x18] sm:$0xff]
        %v751 = vld [vmem:[%s617 + $0x20] sm:$0xff]
        %v752 = vld [vmem:[%s617 + $0x28] sm:$0xff]
        %v753 = vld [vmem:[%s617 + $0x30] sm:$0xff]
        %v754 = vld [vmem:[%s617 + $0x38] sm:$0xff]
        %s755 = scalar_lea.vmem %s730, %s746
        %v756 = vld [vmem:[%s755] sm:$0xff]
        %v757 = vld [vmem:[%s733] sm:$0x1]
        %s758 = scalar_lea.vmem %s725, %s746
        %v759 = vld [vmem:[%s758] sm:$0xff]
        %v760 = vld [vmem:[%s8] sm:$0xff]
        %v761 = vld [vmem:[%s8 + $0x8] sm:$0xff]
        %v762 = vld [vmem:[%s8 + $0x10] sm:$0xff]
        %v763 = vld [vmem:[%s8 + $0x18] sm:$0xff]
        %v764 = vld [vmem:[%s9] sm:$0x1]
        %v766 = vperm.slane %v764, 0
        %vm768 = vcmask 261120
        %v770 = vsel %vm768, %v759, 0
        %772 = vmatpush.msra.mxu0 0.0
        %773 = vmatpush.msra.mxu0 0.0
        %774 = vmatpush.msra.mxu0 0.0
        %775 = vmatpush.msra.mxu0 0.0
        %776 = vmatpush.msra.mxu0 0.0
        %777 = vmatpush.msra.mxu0 0.0
        %778 = vmatpush.msra.mxu0 0.0
        %779 = vmatpush.msra.mxu0 0.0
        %780 = vmatpush.msra.mxu0 0.0
        %781 = vmatpush.msra.mxu0 0.0
        %782 = vmatpush.msra.mxu0 0.0
        %783 = vmatpush.msra.mxu0 0.0
        %784 = vmatpush.msra.mxu0 %v763
        %785 = vmatpush.msra.mxu0 %v762
        %786 = vmatpush.msra.mxu0 %v761
        %787 = vmatpush.msra.mxu0 %v760
        %788 = vmatmul.f32.gmra.mxu0 %v770
        %v789 = vpop.f32.mrf.mxu0
        %v790 = vadd.f32 %v766, %v789
        %791 = vdwg.mxu0
        %p792 = scmp.eq.s32.totalorder %s46, 0
        // Predicated region
        $region93: #{tpu_custom_call.1} parent=75 // pred_check
          %p793 = pneg %p792
        $region94: #{tpu_custom_call.1} parent=75 // pred_check_branch
          %795 = sbr.rel (%p793) target = $region96
        $region95: #{tpu_custom_call.1} parent=75 // pred_region
          %v796 = vld [vmem:[%s725] sm:$0xff]
          %s797 = scalar_lea.vmem %s8, 32
          %v798 = vld [vmem:[%s797] sm:$0xff]
          %v799 = vld [vmem:[%s797 + $0x8] sm:$0xff]
          %v800 = vld [vmem:[%s797 + $0x10] sm:$0xff]
          %v801 = vld [vmem:[%s797 + $0x18] sm:$0xff]
          %s802 = scalar_lea.vmem %s9, 1
          %v803 = vld [vmem:[%s802] sm:$0x1]
          %v805 = vperm.slane %v803, 0
          %v808 = vsel %vm768, %v796, 0
          %810 = vmatpush.msra.mxu0 0.0
          %811 = vmatpush.msra.mxu0 0.0
          %812 = vmatpush.msra.mxu0 0.0
          %813 = vmatpush.msra.mxu0 0.0
          %814 = vmatpush.msra.mxu0 0.0
          %815 = vmatpush.msra.mxu0 0.0
          %816 = vmatpush.msra.mxu0 0.0
          %817 = vmatpush.msra.mxu0 0.0
          %818 = vmatpush.msra.mxu0 0.0
          %819 = vmatpush.msra.mxu0 0.0
          %820 = vmatpush.msra.mxu0 0.0
          %821 = vmatpush.msra.mxu0 0.0
          %822 = vmatpush.msra.mxu0 %v801
          %823 = vmatpush.msra.mxu0 %v800
          %824 = vmatpush.msra.mxu0 %v799
          %825 = vmatpush.msra.mxu0 %v798
          %826 = vmatmul.f32.gmra.mxu0 %v808
          %v827 = vpop.f32.mrf.mxu0
          %v828 = vadd.f32 %v805, %v827
          %829 = vdwg.mxu0
          %830 = vst.msk [vmem:[#allocation2] sm:$0xff] %vm768, %v828
          %s831 = scalar_lea.vmem %s8, 64
          %v832 = vld [vmem:[%s831] sm:$0xff]
          %v833 = vld [vmem:[%s831 + $0x8] sm:$0xff]
          %v834 = vld [vmem:[%s831 + $0x10] sm:$0xff]
          %v835 = vld [vmem:[%s831 + $0x18] sm:$0xff]
          %s836 = scalar_lea.vmem %s9, 2
          %v837 = vld [vmem:[%s836] sm:$0x1]
          %v839 = vperm.slane %v837, 0
          %841 = vmatpush.msra.mxu0 0.0
          %842 = vmatpush.msra.mxu0 0.0
          %843 = vmatpush.msra.mxu0 0.0
          %844 = vmatpush.msra.mxu0 0.0
          %845 = vmatpush.msra.mxu0 0.0
          %846 = vmatpush.msra.mxu0 0.0
          %847 = vmatpush.msra.mxu0 0.0
          %848 = vmatpush.msra.mxu0 0.0
          %849 = vmatpush.msra.mxu0 0.0
          %850 = vmatpush.msra.mxu0 0.0
          %851 = vmatpush.msra.mxu0 0.0
          %852 = vmatpush.msra.mxu0 0.0
          %853 = vmatpush.msra.mxu0 %v835
          %854 = vmatpush.msra.mxu0 %v834
          %855 = vmatpush.msra.mxu0 %v833
          %856 = vmatpush.msra.mxu0 %v832
          %857 = vmatmul.f32.gmra.mxu0 %v808
          %v858 = vpop.f32.mrf.mxu0
          %v859 = vadd.f32 %v839, %v858
          %860 = vdwg.mxu0
          %s861 = scalar_lea.vmem [#allocation2], 8
          %862 = vst.msk [vmem:[%s861] sm:$0xff] %vm768, %v859
        $region96: #{tpu_custom_call.1} parent=75 // pred_fallthru
          _
        %v863 = vld [vmem:[#allocation2] sm:$0xff]
        %s864 = scalar_lea.vmem [#allocation2], 8
        %v865 = vld [vmem:[%s864] sm:$0xff]
        %v866 = vld [vmem:[#allocation8] sm:$0xff]
        %v867 = vld [vmem:[#allocation8 + $0x8] sm:$0xff]
        %v868 = vld [vmem:[%s11] sm:$0x1]
        %v870 = vperm.slane %v868, 0
        %vm872 = vcmask 130048
        %v874 = vsel %vm872, %v747, 0
        %v877 = vsel %vm872, %v748, 0
        %v880 = vsel %vm872, %v749, 0
        %v883 = vsel %vm872, %v750, 0
        %v886 = vsel %vm872, %v751, 0
        %v889 = vsel %vm872, %v752, 0
        %v892 = vsel %vm872, %v753, 0
        %v895 = vsel %vm872, %v754, 0
        %897 = vmatpush.msra.mxu0 0.0
        %898 = vmatpush.msra.mxu0 0.0
        %899 = vmatpush.msra.mxu0 0.0
        %900 = vmatpush.msra.mxu0 0.0
        %901 = vmatpush.msra.mxu0 0.0
        %902 = vmatpush.msra.mxu0 0.0
        %903 = vmatpush.msra.mxu0 0.0
        %904 = vmatpush.msra.mxu0 0.0
        %905 = vmatpush.msra.mxu0 0.0
        %906 = vmatpush.msra.mxu0 0.0
        %907 = vmatpush.msra.mxu0 0.0
        %908 = vmatpush.msra.mxu0 0.0
        %909 = vmatpush.msra.mxu0 0.0
        %910 = vmatpush.msra.mxu0 0.0
        %911 = vmatpush.msra.mxu0 %v867
        %912 = vmatpush.msra.mxu0 %v866
        %913 = vmatmul.f32.gmra.mxu0 %v874
        %v914 = vpop.f32.mrf.mxu0
        %v915 = vadd.f32 %v870, %v914
        %916 = vmatmul.f32.gmra.mxu0 %v877
        %v917 = vpop.f32.mrf.mxu0
        %v918 = vadd.f32 %v870, %v917
        %919 = vmatmul.f32.gmra.mxu0 %v880
        %v920 = vpop.f32.mrf.mxu0
        %v921 = vadd.f32 %v870, %v920
        %922 = vmatmul.f32.gmra.mxu0 %v883
        %v923 = vpop.f32.mrf.mxu0
        %v924 = vadd.f32 %v870, %v923
        %925 = vmatmul.f32.gmra.mxu0 %v886
        %v926 = vpop.f32.mrf.mxu0
        %v927 = vadd.f32 %v870, %v926
        %928 = vmatmul.f32.gmra.mxu0 %v889
        %v929 = vpop.f32.mrf.mxu0
        %v930 = vadd.f32 %v870, %v929
        %931 = vmatmul.f32.gmra.mxu0 %v892
        %v932 = vpop.f32.mrf.mxu0
        %v933 = vadd.f32 %v870, %v932
        %934 = vmatmul.f32.gmra.mxu0 %v895
        %v935 = vpop.f32.mrf.mxu0
        %v936 = vadd.f32 %v870, %v935
        %937 = vdwg.mxu0
        %s938 = scalar_lea.vmem [#allocation8], 16
        %v939 = vld [vmem:[%s938] sm:$0xff]
        %v940 = vld [vmem:[%s938 + $0x8] sm:$0xff]
        %s941 = scalar_lea.vmem %s11, 1
        %v942 = vld [vmem:[%s941] sm:$0x1]
        %v944 = vperm.slane %v942, 0
        %946 = vmatpush.msra.mxu0 0.0
        %947 = vmatpush.msra.mxu0 0.0
        %948 = vmatpush.msra.mxu0 0.0
        %949 = vmatpush.msra.mxu0 0.0
        %950 = vmatpush.msra.mxu0 0.0
        %951 = vmatpush.msra.mxu0 0.0
        %952 = vmatpush.msra.mxu0 0.0
        %953 = vmatpush.msra.mxu0 0.0
        %954 = vmatpush.msra.mxu0 0.0
        %955 = vmatpush.msra.mxu0 0.0
        %956 = vmatpush.msra.mxu0 0.0
        %957 = vmatpush.msra.mxu0 0.0
        %958 = vmatpush.msra.mxu0 0.0
        %959 = vmatpush.msra.mxu0 0.0
        %960 = vmatpush.msra.mxu0 %v940
        %961 = vmatpush.msra.mxu0 %v939
        %962 = vmatmul.f32.gmra.mxu0 %v874
        %v963 = vpop.f32.mrf.mxu0
        %v964 = vadd.f32 %v944, %v963
        %965 = vmatmul.f32.gmra.mxu0 %v877
        %v966 = vpop.f32.mrf.mxu0
        %v967 = vadd.f32 %v944, %v966
        %968 = vmatmul.f32.gmra.mxu0 %v880
        %v969 = vpop.f32.mrf.mxu0
        %v970 = vadd.f32 %v944, %v969
        %971 = vmatmul.f32.gmra.mxu0 %v883
        %v972 = vpop.f32.mrf.mxu0
        %v973 = vadd.f32 %v944, %v972
        %974 = vmatmul.f32.gmra.mxu0 %v886
        %v975 = vpop.f32.mrf.mxu0
        %v976 = vadd.f32 %v944, %v975
        %977 = vmatmul.f32.gmra.mxu0 %v889
        %v978 = vpop.f32.mrf.mxu0
        %v979 = vadd.f32 %v944, %v978
        %980 = vmatmul.f32.gmra.mxu0 %v892
        %v981 = vpop.f32.mrf.mxu0
        %v982 = vadd.f32 %v944, %v981
        %983 = vmatmul.f32.gmra.mxu0 %v895
        %v984 = vpop.f32.mrf.mxu0
        %v985 = vadd.f32 %v944, %v984
        %986 = vdwg.mxu0
        %v988 = vrot.slane %v790, 1
        %v989 = vrot.slane %v790, 2
        %v990 = vrot.slane %v790, 3
        %v991 = vrot.slane %v790, 4
        %v992 = vrot.slane %v790, 5
        %v993 = vrot.slane %v790, 6
        %v994 = vrot.slane %v790, 7
        %v995 = vperm.slane %v790, 0
        %v996 = vperm.slane %v988, 0
        %v997 = vperm.slane %v989, 0
        %v998 = vperm.slane %v990, 0
        %v999 = vperm.slane %v991, 0
        %v1000 = vperm.slane %v992, 0
        %v1001 = vperm.slane %v993, 0
        %v1002 = vperm.slane %v994, 0
        %v1011 = vmul.f32 %v995, %v863
        %v1012 = vmul.f32 %v996, %v863
        %v1013 = vmul.f32 %v997, %v863
        %v1014 = vmul.f32 %v998, %v863
        %v1015 = vmul.f32 %v999, %v863
        %v1016 = vmul.f32 %v1000, %v863
        %v1017 = vmul.f32 %v1001, %v863
        %v1018 = vmul.f32 %v1002, %v863
        %v1019 = vmul.f32 %v1011, %v915
        %v1020 = vmul.f32 %v1012, %v918
        %v1021 = vmul.f32 %v1013, %v921
        %v1022 = vmul.f32 %v1014, %v924
        %v1023 = vmul.f32 %v1015, %v927
        %v1024 = vmul.f32 %v1016, %v930
        %v1025 = vmul.f32 %v1017, %v933
        %v1026 = vmul.f32 %v1018, %v936
        %v1027 = vadd.f32 %v1019, %v964
        %v1028 = vadd.f32 %v1020, %v967
        %v1029 = vadd.f32 %v1021, %v970
        %v1030 = vadd.f32 %v1022, %v973
        %v1031 = vadd.f32 %v1023, %v976
        %v1032 = vadd.f32 %v1024, %v979
        %v1033 = vadd.f32 %v1025, %v982
        %v1034 = vadd.f32 %v1026, %v985
        %v1035 = vld [vmem:[%s744] sm:$0xff]
        %v1036 = vld [vmem:[%s744 + $0x8] sm:$0xff]
        %v1037 = vld [vmem:[%s744 + $0x10] sm:$0xff]
        %v1038 = vld [vmem:[%s744 + $0x18] sm:$0xff]
        %v1039 = vld [vmem:[%s626] sm:$0x1]
        %v1041 = vperm.slane %v1039, 0
        %v1044 = vsel %vm768, %v1027, 0
        %v1047 = vsel %vm768, %v1028, 0
        %v1050 = vsel %vm768, %v1029, 0
        %v1053 = vsel %vm768, %v1030, 0
        %v1056 = vsel %vm768, %v1031, 0
        %v1059 = vsel %vm768, %v1032, 0
        %v1062 = vsel %vm768, %v1033, 0
        %v1065 = vsel %vm768, %v1034, 0
        %1067 = vmatpush.msra.mxu0 0.0
        %1068 = vmatpush.msra.mxu0 0.0
        %1069 = vmatpush.msra.mxu0 0.0
        %1070 = vmatpush.msra.mxu0 0.0
        %1071 = vmatpush.msra.mxu0 0.0
        %1072 = vmatpush.msra.mxu0 0.0
        %1073 = vmatpush.msra.mxu0 0.0
        %1074 = vmatpush.msra.mxu0 0.0
        %1075 = vmatpush.msra.mxu0 0.0
        %1076 = vmatpush.msra.mxu0 0.0
        %1077 = vmatpush.msra.mxu0 0.0
        %1078 = vmatpush.msra.mxu0 0.0
        %1079 = vmatpush.msra.mxu0 %v1038
        %1080 = vmatpush.msra.mxu0 %v1037
        %1081 = vmatpush.msra.mxu0 %v1036
        %1082 = vmatpush.msra.mxu0 %v1035
        %1083 = vmatmul.f32.gmra.mxu0 %v1044
        %v1084 = vpop.f32.mrf.mxu0
        %v1085 = vadd.f32 %v1041, %v1084
        %1086 = vmatmul.f32.gmra.mxu0 %v1047
        %v1087 = vpop.f32.mrf.mxu0
        %v1088 = vadd.f32 %v1041, %v1087
        %1089 = vmatmul.f32.gmra.mxu0 %v1050
        %v1090 = vpop.f32.mrf.mxu0
        %v1091 = vadd.f32 %v1041, %v1090
        %1092 = vmatmul.f32.gmra.mxu0 %v1053
        %v1093 = vpop.f32.mrf.mxu0
        %v1094 = vadd.f32 %v1041, %v1093
        %1095 = vmatmul.f32.gmra.mxu0 %v1056
        %v1096 = vpop.f32.mrf.mxu0
        %v1097 = vadd.f32 %v1041, %v1096
        %1098 = vmatmul.f32.gmra.mxu0 %v1059
        %v1099 = vpop.f32.mrf.mxu0
        %v1100 = vadd.f32 %v1041, %v1099
        %1101 = vmatmul.f32.gmra.mxu0 %v1062
        %v1102 = vpop.f32.mrf.mxu0
        %v1103 = vadd.f32 %v1041, %v1102
        %1104 = vmatmul.f32.gmra.mxu0 %v1065
        %v1105 = vpop.f32.mrf.mxu0
        %v1106 = vadd.f32 %v1041, %v1105
        %1107 = vdwg.mxu0
        %v1109 = vrot.slane %v756, 1
        %v1110 = vrot.slane %v756, 2
        %v1111 = vrot.slane %v756, 3
        %v1112 = vrot.slane %v756, 4
        %v1113 = vrot.slane %v756, 5
        %v1114 = vrot.slane %v756, 6
        %v1115 = vrot.slane %v756, 7
        %v1116 = vperm.slane %v757, 0
        %v1117 = vlaneseq
        %v1118 = vshrl.u32 %v1117, 7
        %1120 = vset.pattern.permute.xlu0 %v1118
        %1121 = vperm.xlu0 %1120, %v1116
        %v1122 = vpop.permute.xlu0 %1121
        %v1123 = vperm.slane %v756, 0
        %v1124 = vperm.slane %v1109, 0
        %v1125 = vperm.slane %v1110, 0
        %v1126 = vperm.slane %v1111, 0
        %v1127 = vperm.slane %v1112, 0
        %v1128 = vperm.slane %v1113, 0
        %v1129 = vperm.slane %v1114, 0
        %v1130 = vperm.slane %v1115, 0
        %v1139 = vmul.f32 %v1123, %v1122
        %v1140 = vmul.f32 %v1124, %v1122
        %v1141 = vmul.f32 %v1125, %v1122
        %v1142 = vmul.f32 %v1126, %v1122
        %v1143 = vmul.f32 %v1127, %v1122
        %v1144 = vmul.f32 %v1128, %v1122
        %v1145 = vmul.f32 %v1129, %v1122
        %v1146 = vmul.f32 %v1130, %v1122
        %1148 = vset.pattern.permute.xlu0 0
        %1149 = vperm.xlu0 %1148, %v1139
        %v1150 = vpop.permute.xlu0 %1149
        %1153 = vset.pattern.permute.xlu0 0
        %1154 = vperm.xlu0 %1153, %v1140
        %v1155 = vpop.permute.xlu0 %1154
        %1158 = vset.pattern.permute.xlu0 0
        %1159 = vperm.xlu0 %1158, %v1141
        %v1160 = vpop.permute.xlu0 %1159
        %1163 = vset.pattern.permute.xlu0 0
        %1164 = vperm.xlu0 %1163, %v1142
        %v1165 = vpop.permute.xlu0 %1164
        %1168 = vset.pattern.permute.xlu0 0
        %1169 = vperm.xlu0 %1168, %v1143
        %v1170 = vpop.permute.xlu0 %1169
        %1173 = vset.pattern.permute.xlu0 0
        %1174 = vperm.xlu0 %1173, %v1144
        %v1175 = vpop.permute.xlu0 %1174
        %1178 = vset.pattern.permute.xlu0 0
        %1179 = vperm.xlu0 %1178, %v1145
        %v1180 = vpop.permute.xlu0 %1179
        %1183 = vset.pattern.permute.xlu0 0
        %1184 = vperm.xlu0 %1183, %v1146
        %v1185 = vpop.permute.xlu0 %1184
        %v1187 = vmul.f32 %v1085, %v1150
        %v1188 = vmul.f32 %v1088, %v1155
        %v1189 = vmul.f32 %v1091, %v1160
        %v1190 = vmul.f32 %v1094, %v1165
        %v1191 = vmul.f32 %v1097, %v1170
        %v1192 = vmul.f32 %v1100, %v1175
        %v1193 = vmul.f32 %v1103, %v1180
        %v1194 = vmul.f32 %v1106, %v1185
        %1195 = vst.msk [vmem:[%s714] sm:$0xff] %vm872, %v1187
        %1196 = vst.msk [vmem:[%s714 + $0x8] sm:$0xff] %vm872, %v1188
        %1197 = vst.msk [vmem:[%s714 + $0x10] sm:$0xff] %vm872, %v1189
        %1198 = vst.msk [vmem:[%s714 + $0x18] sm:$0xff] %vm872, %v1190
        %1199 = vst.msk [vmem:[%s714 + $0x20] sm:$0xff] %vm872, %v1191
        %1200 = vst.msk [vmem:[%s714 + $0x28] sm:$0xff] %vm872, %v1192
        %1201 = vst.msk [vmem:[%s714 + $0x30] sm:$0xff] %vm872, %v1193
        %1202 = vst.msk [vmem:[%s714 + $0x38] sm:$0xff] %vm872, %v1194
        %v1203 = vsub.f32 %v757, 1.0
        %v1204 = vmul.f32 %v1203, 1e+30
        %v1205 = vperm.slane %v1204, 0
        %v1206 = vlaneseq
        %v1207 = vshrl.u32 %v1206, 7
        %1209 = vset.pattern.permute.xlu0 %v1207
        %1210 = vperm.xlu0 %1209, %v1205
        %v1211 = vpop.permute.xlu0 %1210
        %v1212 = vadd.f32 %v1027, %v1211
        %v1213 = vadd.f32 %v1028, %v1211
        %v1214 = vadd.f32 %v1029, %v1211
        %v1215 = vadd.f32 %v1030, %v1211
        %v1216 = vadd.f32 %v1031, %v1211
        %v1217 = vadd.f32 %v1032, %v1211
        %v1218 = vadd.f32 %v1033, %v1211
        %v1219 = vadd.f32 %v1034, %v1211
        %v1220 = vsel %vm768, %v1212, -inf
        %v1221 = vrot.slane %v1220, 4
        %v1222 = vmax.f32 %v1220, %v1221
        %v1223 = vrot.slane %v1222, 2
        %v1224 = vmax.f32 %v1222, %v1223
        %v1225 = vrot.slane %v1224, 1
        %v1226 = vmax.f32 %v1224, %v1225
        %v1227 = vsel %vm768, %v1213, -inf
        %v1228 = vrot.slane %v1227, 4
        %v1229 = vmax.f32 %v1227, %v1228
        %v1230 = vrot.slane %v1229, 2
        %v1231 = vmax.f32 %v1229, %v1230
        %v1232 = vrot.slane %v1231, 1
        %v1233 = vmax.f32 %v1231, %v1232
        %v1234 = vsel %vm768, %v1214, -inf
        %v1235 = vrot.slane %v1234, 4
        %v1236 = vmax.f32 %v1234, %v1235
        %v1237 = vrot.slane %v1236, 2
        %v1238 = vmax.f32 %v1236, %v1237
        %v1239 = vrot.slane %v1238, 1
        %v1240 = vmax.f32 %v1238, %v1239
        %v1241 = vsel %vm768, %v1215, -inf
        %v1242 = vrot.slane %v1241, 4
        %v1243 = vmax.f32 %v1241, %v1242
        %v1244 = vrot.slane %v1243, 2
        %v1245 = vmax.f32 %v1243, %v1244
        %v1246 = vrot.slane %v1245, 1
        %v1247 = vmax.f32 %v1245, %v1246
        %v1248 = vsel %vm768, %v1216, -inf
        %v1249 = vrot.slane %v1248, 4
        %v1250 = vmax.f32 %v1248, %v1249
        %v1251 = vrot.slane %v1250, 2
        %v1252 = vmax.f32 %v1250, %v1251
        %v1253 = vrot.slane %v1252, 1
        %v1254 = vmax.f32 %v1252, %v1253
        %v1255 = vsel %vm768, %v1217, -inf
        %v1256 = vrot.slane %v1255, 4
        %v1257 = vmax.f32 %v1255, %v1256
        %v1258 = vrot.slane %v1257, 2
        %v1259 = vmax.f32 %v1257, %v1258
        %v1260 = vrot.slane %v1259, 1
        %v1261 = vmax.f32 %v1259, %v1260
        %v1262 = vsel %vm768, %v1218, -inf
        %v1263 = vrot.slane %v1262, 4
        %v1264 = vmax.f32 %v1262, %v1263
        %v1265 = vrot.slane %v1264, 2
        %v1266 = vmax.f32 %v1264, %v1265
        %v1267 = vrot.slane %v1266, 1
        %v1268 = vmax.f32 %v1266, %v1267
        %v1269 = vsel %vm768, %v1219, -inf
        %v1270 = vrot.slane %v1269, 4
        %v1271 = vmax.f32 %v1269, %v1270
        %v1272 = vrot.slane %v1271, 2
        %v1273 = vmax.f32 %v1271, %v1272
        %v1274 = vrot.slane %v1273, 1
        %v1275 = vmax.f32 %v1273, %v1274
        %v1276 = vsub.f32 %v1212, %v1226
        %v1277 = vsub.f32 %v1213, %v1233
        %v1278 = vsub.f32 %v1214, %v1240
        %v1279 = vsub.f32 %v1215, %v1247
        %v1280 = vsub.f32 %v1216, %v1254
        %v1281 = vsub.f32 %v1217, %v1261
        %v1282 = vsub.f32 %v1218, %v1268
        %v1283 = vsub.f32 %v1219, %v1275
        %v1284 = vmul.f32 %v1276, 1.442695
        %v1285 = vpow.pop %v1284
        %v1286 = vmul.f32 %v1277, 1.442695
        %v1287 = vpow.pop %v1286
        %v1288 = vmul.f32 %v1278, 1.442695
        %v1289 = vpow.pop %v1288
        %v1290 = vmul.f32 %v1279, 1.442695
        %v1291 = vpow.pop %v1290
        %v1292 = vmul.f32 %v1280, 1.442695
        %v1293 = vpow.pop %v1292
        %v1294 = vmul.f32 %v1281, 1.442695
        %v1295 = vpow.pop %v1294
        %v1296 = vmul.f32 %v1282, 1.442695
        %v1297 = vpow.pop %v1296
        %v1298 = vmul.f32 %v1283, 1.442695
        %v1299 = vpow.pop %v1298
        %v1300 = vsel %vm768, %v1285, 0.0
        %v1301 = vrot.slane %v1300, 4
        %v1302 = vadd.f32 %v1300, %v1301
        %v1303 = vrot.slane %v1302, 2
        %v1304 = vadd.f32 %v1302, %v1303
        %v1305 = vrot.slane %v1304, 1
        %v1306 = vadd.f32 %v1304, %v1305
        %v1307 = vsel %vm768, %v1287, 0.0
        %v1308 = vrot.slane %v1307, 4
        %v1309 = vadd.f32 %v1307, %v1308
        %v1310 = vrot.slane %v1309, 2
        %v1311 = vadd.f32 %v1309, %v1310
        %v1312 = vrot.slane %v1311, 1
        %v1313 = vadd.f32 %v1311, %v1312
        %v1314 = vsel %vm768, %v1289, 0.0
        %v1315 = vrot.slane %v1314, 4
        %v1316 = vadd.f32 %v1314, %v1315
        %v1317 = vrot.slane %v1316, 2
        %v1318 = vadd.f32 %v1316, %v1317
        %v1319 = vrot.slane %v1318, 1
        %v1320 = vadd.f32 %v1318, %v1319
        %v1321 = vsel %vm768, %v1291, 0.0
        %v1322 = vrot.slane %v1321, 4
        %v1323 = vadd.f32 %v1321, %v1322
        %v1324 = vrot.slane %v1323, 2
        %v1325 = vadd.f32 %v1323, %v1324
        %v1326 = vrot.slane %v1325, 1
        %v1327 = vadd.f32 %v1325, %v1326
        %v1328 = vsel %vm768, %v1293, 0.0
        %v1329 = vrot.slane %v1328, 4
        %v1330 = vadd.f32 %v1328, %v1329
        %v1331 = vrot.slane %v1330, 2
        %v1332 = vadd.f32 %v1330, %v1331
        %v1333 = vrot.slane %v1332, 1
        %v1334 = vadd.f32 %v1332, %v1333
        %v1335 = vsel %vm768, %v1295, 0.0
        %v1336 = vrot.slane %v1335, 4
        %v1337 = vadd.f32 %v1335, %v1336
        %v1338 = vrot.slane %v1337, 2
        %v1339 = vadd.f32 %v1337, %v1338
        %v1340 = vrot.slane %v1339, 1
        %v1341 = vadd.f32 %v1339, %v1340
        %v1342 = vsel %vm768, %v1297, 0.0
        %v1343 = vrot.slane %v1342, 4
        %v1344 = vadd.f32 %v1342, %v1343
        %v1345 = vrot.slane %v1344, 2
        %v1346 = vadd.f32 %v1344, %v1345
        %v1347 = vrot.slane %v1346, 1
        %v1348 = vadd.f32 %v1346, %v1347
        %v1349 = vsel %vm768, %v1299, 0.0
        %v1350 = vrot.slane %v1349, 4
        %v1351 = vadd.f32 %v1349, %v1350
        %v1352 = vrot.slane %v1351, 2
        %v1353 = vadd.f32 %v1351, %v1352
        %v1354 = vrot.slane %v1353, 1
        %v1355 = vadd.f32 %v1353, %v1354
        %v1356 = vmul.f32 %v1285, %v865
        %v1357 = vmul.f32 %v1287, %v865
        %v1358 = vmul.f32 %v1289, %v865
        %v1359 = vmul.f32 %v1291, %v865
        %v1360 = vmul.f32 %v1293, %v865
        %v1361 = vmul.f32 %v1295, %v865
        %v1362 = vmul.f32 %v1297, %v865
        %v1363 = vmul.f32 %v1299, %v865
        %v1364 = vsel %vm768, %v1356, 0.0
        %v1365 = vrot.slane %v1364, 4
        %v1366 = vadd.f32 %v1364, %v1365
        %v1367 = vrot.slane %v1366, 2
        %v1368 = vadd.f32 %v1366, %v1367
        %v1369 = vrot.slane %v1368, 1
        %v1370 = vadd.f32 %v1368, %v1369
        %v1371 = vsel %vm768, %v1357, 0.0
        %v1372 = vrot.slane %v1371, 4
        %v1373 = vadd.f32 %v1371, %v1372
        %v1374 = vrot.slane %v1373, 2
        %v1375 = vadd.f32 %v1373, %v1374
        %v1376 = vrot.slane %v1375, 1
        %v1377 = vadd.f32 %v1375, %v1376
        %v1378 = vsel %vm768, %v1358, 0.0
        %v1379 = vrot.slane %v1378, 4
        %v1380 = vadd.f32 %v1378, %v1379
        %v1381 = vrot.slane %v1380, 2
        %v1382 = vadd.f32 %v1380, %v1381
        %v1383 = vrot.slane %v1382, 1
        %v1384 = vadd.f32 %v1382, %v1383
        %v1385 = vsel %vm768, %v1359, 0.0
        %v1386 = vrot.slane %v1385, 4
        %v1387 = vadd.f32 %v1385, %v1386
        %v1388 = vrot.slane %v1387, 2
        %v1389 = vadd.f32 %v1387, %v1388
        %v1390 = vrot.slane %v1389, 1
        %v1391 = vadd.f32 %v1389, %v1390
        %v1392 = vsel %vm768, %v1360, 0.0
        %v1393 = vrot.slane %v1392, 4
        %v1394 = vadd.f32 %v1392, %v1393
        %v1395 = vrot.slane %v1394, 2
        %v1396 = vadd.f32 %v1394, %v1395
        %v1397 = vrot.slane %v1396, 1
        %v1398 = vadd.f32 %v1396, %v1397
        %v1399 = vsel %vm768, %v1361, 0.0
        %v1400 = vrot.slane %v1399, 4
        %v1401 = vadd.f32 %v1399, %v1400
        %v1402 = vrot.slane %v1401, 2
        %v1403 = vadd.f32 %v1401, %v1402
        %v1404 = vrot.slane %v1403, 1
        %v1405 = vadd.f32 %v1403, %v1404
        %v1406 = vsel %vm768, %v1362, 0.0
        %v1407 = vrot.slane %v1406, 4
        %v1408 = vadd.f32 %v1406, %v1407
        %v1409 = vrot.slane %v1408, 2
        %v1410 = vadd.f32 %v1408, %v1409
        %v1411 = vrot.slane %v1410, 1
        %v1412 = vadd.f32 %v1410, %v1411
        %v1413 = vsel %vm768, %v1363, 0.0
        %v1414 = vrot.slane %v1413, 4
        %v1415 = vadd.f32 %v1413, %v1414
        %v1416 = vrot.slane %v1415, 2
        %v1417 = vadd.f32 %v1415, %v1416
        %v1418 = vrot.slane %v1417, 1
        %v1419 = vadd.f32 %v1417, %v1418
        %v1420 = vrcp.pop %v1306
        %v1421 = vmul.f32 %v1306, %v1420
        %v1422 = vsub.f32 1.0, %v1421
        %v1423 = vmul.f32 %v1420, %v1422
        %v1424 = vadd.f32 %v1420, %v1423
        %vm1425 = vweird.f32 %v1306
        %vm1426 = vweird.f32 %v1420
        %vm1427 = vmor %vm1425, %vm1426
        %v1428 = vsel %vm1427, %v1420, %v1424
        %v1429 = vand.u32 2147483647, %v1306
        %vm1430 = vcmp.eq.f32.partialorder %v1429, 8.507059e+37
        %v1431 = vand.u32 %v1306, 2147483648
        %v1432 = vor.u32 1.1754944e-38, %v1431
        %v1433 = vsel %vm1430, %v1432, %v1428
        %v1434 = vmul.f32 %v1370, %v1433
        %v1435 = vrcp.pop %v1313
        %v1436 = vmul.f32 %v1313, %v1435
        %v1437 = vsub.f32 1.0, %v1436
        %v1438 = vmul.f32 %v1435, %v1437
        %v1439 = vadd.f32 %v1435, %v1438
        %vm1440 = vweird.f32 %v1313
        %vm1441 = vweird.f32 %v1435
        %vm1442 = vmor %vm1440, %vm1441
        %v1443 = vsel %vm1442, %v1435, %v1439
        %v1444 = vand.u32 2147483647, %v1313
        %vm1445 = vcmp.eq.f32.partialorder %v1444, 8.507059e+37
        %v1446 = vand.u32 %v1313, 2147483648
        %v1447 = vor.u32 1.1754944e-38, %v1446
        %v1448 = vsel %vm1445, %v1447, %v1443
        %v1449 = vmul.f32 %v1377, %v1448
        %v1450 = vrcp.pop %v1320
        %v1451 = vmul.f32 %v1320, %v1450
        %v1452 = vsub.f32 1.0, %v1451
        %v1453 = vmul.f32 %v1450, %v1452
        %v1454 = vadd.f32 %v1450, %v1453
        %vm1455 = vweird.f32 %v1320
        %vm1456 = vweird.f32 %v1450
        %vm1457 = vmor %vm1455, %vm1456
        %v1458 = vsel %vm1457, %v1450, %v1454
        %v1459 = vand.u32 2147483647, %v1320
        %vm1460 = vcmp.eq.f32.partialorder %v1459, 8.507059e+37
        %v1461 = vand.u32 %v1320, 2147483648
        %v1462 = vor.u32 1.1754944e-38, %v1461
        %v1463 = vsel %vm1460, %v1462, %v1458
        %v1464 = vmul.f32 %v1384, %v1463
        %v1465 = vrcp.pop %v1327
        %v1466 = vmul.f32 %v1327, %v1465
        %v1467 = vsub.f32 1.0, %v1466
        %v1468 = vmul.f32 %v1465, %v1467
        %v1469 = vadd.f32 %v1465, %v1468
        %vm1470 = vweird.f32 %v1327
        %vm1471 = vweird.f32 %v1465
        %vm1472 = vmor %vm1470, %vm1471
        %v1473 = vsel %vm1472, %v1465, %v1469
        %v1474 = vand.u32 2147483647, %v1327
        %vm1475 = vcmp.eq.f32.partialorder %v1474, 8.507059e+37
        %v1476 = vand.u32 %v1327, 2147483648
        %v1477 = vor.u32 1.1754944e-38, %v1476
        %v1478 = vsel %vm1475, %v1477, %v1473
        %v1479 = vmul.f32 %v1391, %v1478
        %v1480 = vrcp.pop %v1334
        %v1481 = vmul.f32 %v1334, %v1480
        %v1482 = vsub.f32 1.0, %v1481
        %v1483 = vmul.f32 %v1480, %v1482
        %v1484 = vadd.f32 %v1480, %v1483
        %vm1485 = vweird.f32 %v1334
        %vm1486 = vweird.f32 %v1480
        %vm1487 = vmor %vm1485, %vm1486
        %v1488 = vsel %vm1487, %v1480, %v1484
        %v1489 = vand.u32 2147483647, %v1334
        %vm1490 = vcmp.eq.f32.partialorder %v1489, 8.507059e+37
        %v1491 = vand.u32 %v1334, 2147483648
        %v1492 = vor.u32 1.1754944e-38, %v1491
        %v1493 = vsel %vm1490, %v1492, %v1488
        %v1494 = vmul.f32 %v1398, %v1493
        %v1495 = vrcp.pop %v1341
        %v1496 = vmul.f32 %v1341, %v1495
        %v1497 = vsub.f32 1.0, %v1496
        %v1498 = vmul.f32 %v1495, %v1497
        %v1499 = vadd.f32 %v1495, %v1498
        %vm1500 = vweird.f32 %v1341
        %vm1501 = vweird.f32 %v1495
        %vm1502 = vmor %vm1500, %vm1501
        %v1503 = vsel %vm1502, %v1495, %v1499
        %v1504 = vand.u32 2147483647, %v1341
        %vm1505 = vcmp.eq.f32.partialorder %v1504, 8.507059e+37
        %v1506 = vand.u32 %v1341, 2147483648
        %v1507 = vor.u32 1.1754944e-38, %v1506
        %v1508 = vsel %vm1505, %v1507, %v1503
        %v1509 = vmul.f32 %v1405, %v1508
        %v1510 = vrcp.pop %v1348
        %v1511 = vmul.f32 %v1348, %v1510
        %v1512 = vsub.f32 1.0, %v1511
        %v1513 = vmul.f32 %v1510, %v1512
        %v1514 = vadd.f32 %v1510, %v1513
        %vm1515 = vweird.f32 %v1348
        %vm1516 = vweird.f32 %v1510
        %vm1517 = vmor %vm1515, %vm1516
        %v1518 = vsel %vm1517, %v1510, %v1514
        %v1519 = vand.u32 2147483647, %v1348
        %vm1520 = vcmp.eq.f32.partialorder %v1519, 8.507059e+37
        %v1521 = vand.u32 %v1348, 2147483648
        %v1522 = vor.u32 1.1754944e-38, %v1521
        %v1523 = vsel %vm1520, %v1522, %v1518
        %v1524 = vmul.f32 %v1412, %v1523
        %v1525 = vrcp.pop %v1355
        %v1526 = vmul.f32 %v1355, %v1525
        %v1527 = vsub.f32 1.0, %v1526
        %v1528 = vmul.f32 %v1525, %v1527
        %v1529 = vadd.f32 %v1525, %v1528
        %vm1530 = vweird.f32 %v1355
        %vm1531 = vweird.f32 %v1525
        %vm1532 = vmor %vm1530, %vm1531
        %v1533 = vsel %vm1532, %v1525, %v1529
        %v1534 = vand.u32 2147483647, %v1355
        %vm1535 = vcmp.eq.f32.partialorder %v1534, 8.507059e+37
        %v1536 = vand.u32 %v1355, 2147483648
        %v1537 = vor.u32 1.1754944e-38, %v1536
        %v1538 = vsel %vm1535, %v1537, %v1533
        %v1539 = vmul.f32 %v1419, %v1538
        %v1540 = vld [vmem:[%s739] sm:$0x1]
        %v1541 = vld [vmem:[%s736] sm:$0x1]
        %v1543 = vperm.slane %v1541, 0
        %vm1553 = vcmask 1041409
        %v1554 = vsel %vm1553, %v1449, %v1434
        %vm1555 = vcmask 1042434
        %v1556 = vsel %vm1555, %v1464, %v1554
        %vm1557 = vcmask 1043459
        %v1558 = vsel %vm1557, %v1479, %v1556
        %vm1559 = vcmask 1044484
        %v1560 = vsel %vm1559, %v1494, %v1558
        %vm1561 = vcmask 1045509
        %v1562 = vsel %vm1561, %v1509, %v1560
        %vm1563 = vcmask 1046534
        %v1564 = vsel %vm1563, %v1524, %v1562
        %vm1565 = vcmask 1047559
        %v1566 = vsel %vm1565, %v1539, %v1564
        %v1568 = vmul.f32 %v1543, %v1566
        %v1570 = vperm.slane %v1540, 0
        %v1572 = vadd.f32 %v1570, %v1568
        %v1573 = vld [vmem:[#allocation9] sm:$0xff]
        %v1574 = vld [vmem:[#allocation9 + $0x8] sm:$0xff]
        %v1575 = vld [vmem:[#allocation9 + $0x10] sm:$0xff]
        %v1576 = vld [vmem:[#allocation9 + $0x18] sm:$0xff]
        %v1577 = vld [vmem:[%s13] sm:$0x1]
        %v1579 = vperm.slane %v1577, 0
        %v1582 = vsel %vm768, %v1572, 0
        %1584 = vmatpush.msra.mxu0 0.0
        %1585 = vmatpush.msra.mxu0 0.0
        %1586 = vmatpush.msra.mxu0 0.0
        %1587 = vmatpush.msra.mxu0 0.0
        %1588 = vmatpush.msra.mxu0 0.0
        %1589 = vmatpush.msra.mxu0 0.0
        %1590 = vmatpush.msra.mxu0 0.0
        %1591 = vmatpush.msra.mxu0 0.0
        %1592 = vmatpush.msra.mxu0 0.0
        %1593 = vmatpush.msra.mxu0 0.0
        %1594 = vmatpush.msra.mxu0 0.0
        %1595 = vmatpush.msra.mxu0 0.0
        %1596 = vmatpush.msra.mxu0 %v1576
        %1597 = vmatpush.msra.mxu0 %v1575
        %1598 = vmatpush.msra.mxu0 %v1574
        %1599 = vmatpush.msra.mxu0 %v1573
        %1600 = vmatmul.f32.gmra.mxu0 %v1582
        %v1601 = vpop.f32.mrf.mxu0
        %v1602 = vadd.f32 %v1579, %v1601
        %1603 = vdwg.mxu0
        %1604 = vset.pattern.permute.xlu0 0
        %1605 = vperm.xlu0 %1604, %v756
        %v1606 = vpop.permute.xlu0 %1605
        %v1608 = vmul.f32 %v1602, %v1606
        %1609 = vst.msk [vmem:[%s707] sm:$0xff] %vm768, %v1608
        %v1610 = vsel %vm872, %v747, 0.0
        %v1611 = vsel %vm872, %v748, 0.0
        %v1612 = vadd.f32 %v1610, %v1611
        %v1613 = vsel %vm872, %v749, 0.0
        %v1614 = vadd.f32 %v1612, %v1613
        %v1615 = vsel %vm872, %v750, 0.0
        %v1616 = vadd.f32 %v1614, %v1615
        %v1617 = vsel %vm872, %v751, 0.0
        %v1618 = vadd.f32 %v1616, %v1617
        %v1619 = vsel %vm872, %v752, 0.0
        %v1620 = vadd.f32 %v1618, %v1619
        %v1621 = vsel %vm872, %v753, 0.0
        %v1622 = vadd.f32 %v1620, %v1621
        %v1623 = vsel %vm872, %v754, 0.0
        %v1624 = vadd.f32 %v1622, %v1623
        %v1625 = vrot.slane %v1624, 4
        %v1626 = vadd.f32 %v1624, %v1625
        %v1627 = vrot.slane %v1626, 2
        %v1628 = vadd.f32 %v1626, %v1627
        %v1629 = vrot.slane %v1628, 1
        %v1630 = vadd.f32 %v1628, %v1629
        %v1631 = vmul.f32 %v747, %v747
        %v1632 = vmul.f32 %v748, %v748
        %v1633 = vmul.f32 %v749, %v749
        %v1634 = vmul.f32 %v750, %v750
        %v1635 = vmul.f32 %v751, %v751
        %v1636 = vmul.f32 %v752, %v752
        %v1637 = vmul.f32 %v753, %v753
        %v1638 = vmul.f32 %v754, %v754
        %v1639 = vsel %vm872, %v1631, 0.0
        %v1640 = vsel %vm872, %v1632, 0.0
        %v1641 = vadd.f32 %v1639, %v1640
        %v1642 = vsel %vm872, %v1633, 0.0
        %v1643 = vadd.f32 %v1641, %v1642
        %v1644 = vsel %vm872, %v1634, 0.0
        %v1645 = vadd.f32 %v1643, %v1644
        %v1646 = vsel %vm872, %v1635, 0.0
        %v1647 = vadd.f32 %v1645, %v1646
        %v1648 = vsel %vm872, %v1636, 0.0
        %v1649 = vadd.f32 %v1647, %v1648
        %v1650 = vsel %vm872, %v1637, 0.0
        %v1651 = vadd.f32 %v1649, %v1650
        %v1652 = vsel %vm872, %v1638, 0.0
        %v1653 = vadd.f32 %v1651, %v1652
        %v1654 = vrot.slane %v1653, 4
        %v1655 = vadd.f32 %v1653, %v1654
        %v1656 = vrot.slane %v1655, 2
        %v1657 = vadd.f32 %v1655, %v1656
        %v1658 = vrot.slane %v1657, 1
        %v1659 = vadd.f32 %v1657, %v1658
        %v1660 = vsel %vm872, %v747, inf
        %v1661 = vsel %vm872, %v748, inf
        %v1662 = vsel %vm872, %v749, inf
        %v1663 = vsel %vm872, %v750, inf
        %v1664 = vsel %vm872, %v751, inf
        %v1665 = vmin.f32 %v1660, %v1664
        %v1666 = vsel %vm872, %v752, inf
        %v1667 = vmin.f32 %v1661, %v1666
        %v1668 = vsel %vm872, %v753, inf
        %v1669 = vmin.f32 %v1662, %v1668
        %v1670 = vsel %vm872, %v754, inf
        %v1671 = vmin.f32 %v1663, %v1670
        %v1672 = vmin.f32 %v1665, %v1667
        %v1673 = vmin.f32 %v1669, %v1671
        %v1674 = vmin.f32 %v1672, %v1673
        %v1675 = vrot.slane %v1674, 4
        %v1676 = vmin.f32 %v1674, %v1675
        %v1677 = vrot.slane %v1676, 2
        %v1678 = vmin.f32 %v1676, %v1677
        %v1679 = vrot.slane %v1678, 1
        %v1680 = vmin.f32 %v1678, %v1679
        %v1681 = vsel %vm872, %v747, -inf
        %v1682 = vsel %vm872, %v748, -inf
        %v1683 = vsel %vm872, %v749, -inf
        %v1684 = vsel %vm872, %v750, -inf
        %v1685 = vsel %vm872, %v751, -inf
        %v1686 = vmax.f32 %v1681, %v1685
        %v1687 = vsel %vm872, %v752, -inf
        %v1688 = vmax.f32 %v1682, %v1687
        %v1689 = vsel %vm872, %v753, -inf
        %v1690 = vmax.f32 %v1683, %v1689
        %v1691 = vsel %vm872, %v754, -inf
        %v1692 = vmax.f32 %v1684, %v1691
        %v1693 = vmax.f32 %v1686, %v1688
        %v1694 = vmax.f32 %v1690, %v1692
        %v1695 = vmax.f32 %v1693, %v1694
        %v1696 = vrot.slane %v1695, 4
        %v1697 = vmax.f32 %v1695, %v1696
        %v1698 = vrot.slane %v1697, 2
        %v1699 = vmax.f32 %v1697, %v1698
        %v1700 = vrot.slane %v1699, 1
        %v1701 = vmax.f32 %v1699, %v1700
        %vm1702 = vcmask 1040384
        %v1703 = vsel %vm1702, %v1630, %v1659
        %vm1704 = vcmask 1041408
        %v1705 = vsel %vm1704, %v1703, %v1680
        %vm1706 = vcmask 1042432
        %v1707 = vsel %vm1706, %v1705, %v1701
        // Predicated region
        $region97: #{tpu_custom_call.1} parent=75 // pred_check
          %p1708 = pneg %p792
        $region98: #{tpu_custom_call.1} parent=75 // pred_check_branch
          %1710 = sbr.rel (%p1708) target = $region100
        $region99: #{tpu_custom_call.1} parent=75 // pred_region
          %vm1711 = vcmask 125952
          %1712 = vst.msk [vmem:[%s721] sm:$0xf] %vm1711, %v1707
        $region100: #{tpu_custom_call.1} parent=75 // pred_fallthru
          _
        %p1713 = scmp.ne.s32.totalorder %s46, 0
        // Predicated region
        $region101: #{tpu_custom_call.1} parent=75 // pred_check
          %p1714 = pneg %p1713
        $region102: #{tpu_custom_call.1} parent=75 // pred_check_branch
          %1716 = sbr.rel (%p1714) target = $region104
        $region103: #{tpu_custom_call.1} parent=75 // pred_region
          %v1717 = vld [vmem:[%s721] sm:$0xf]
          %v1718 = vlaneseq
          %v1719 = vshrl.u32 %v1718, 7
          %vm1720 = vcmp.lt.s32.totalorder %v1719, 2
          %v1721 = vadd.f32 %v1717, %v1707
          %vm1722 = vcmp.eq.s32.totalorder %v1719, 2
          %v1723 = vmin.f32 %v1717, %v1707
          %v1724 = vmax.f32 %v1717, %v1707
          %v1725 = vsel %vm1722, %v1723, %v1724
          %v1726 = vsel %vm1720, %v1721, %v1725
          %vm1727 = vcmask 125952
          %1728 = vst.msk [vmem:[%s721] sm:$0xf] %vm1727, %v1726
        $region104: #{tpu_custom_call.1} parent=75 // pred_fallthru
          _
        %s1729 = sand.u32 %s399, 1
        %s1730 = scalar_lea.sflag [#allocation5], %s1729
        %s1731 = sand.u32 %s399, 1
        %s1732 = smul.addr %s1731, 8
        %s1733 = scalar_lea.vmem [#allocation11], %s1732
        %s1734 = sand.u32 %s41, 1
        %s1735 = scalar_lea.sflag [#allocation13], %s1734
        %s1736 = sand.u32 %s427, 1
        %s1737 = smul.addr %s1736, 64
        %s1738 = scalar_lea.vmem [#allocation12], %s1737
        %s1739 = sand.u32 %s41, 1
        %s1740 = scalar_lea.sflag [#allocation13], %s1739
        %s1741 = sand.u32 %s453, 1
        %s1742 = smul.addr %s1741, 4
        %s1743 = scalar_lea.vmem [#allocation14], %s1742
        // Predicated region
        $region105: #{tpu_custom_call.1} parent=75 // pred_check
          %p1744 = pneg %p409
        $region106: #{tpu_custom_call.1} parent=75 // pred_check_branch
          %1746 = sbr.rel (%p1744) target = $region108
        $region107: #{tpu_custom_call.1} parent=75 // pred_region
          %1748 = vsyncadd %s1730, 0
          %s1749 = sadd.s32 %s46, %s45
          %s1750 = smul.addr %s1749, 8
          %s1751 = scalar_lea.hbm %s14, %s1750
          %s1753 = sshll.u32 %s1733, 4
          %s1754 = int_to_ptr.vmem [resolvable:$true] %s1753
          %s1755 = sshll.u32 %s1751, 4
          %s1756 = int_to_ptr.hbm [resolvable:$true] %s1755
          %1758 = dma.vmem_to_hbm [thread:$0]  %s1754, 128, %s1756, %s1730
        $region108: #{tpu_custom_call.1} parent=75 // pred_fallthru
          _
        // Predicated region
        $region109: #{tpu_custom_call.1} parent=75 // pred_check
          %p1759 = pneg %p437
        $region110: #{tpu_custom_call.1} parent=75 // pred_check_branch
          %1761 = sbr.rel (%p1759) target = $region112
        $region111: #{tpu_custom_call.1} parent=75 // pred_region
          %s1762 = smul.u32 8, %s46
          %1764 = vsyncadd %s1735, 0
          %s1765 = smul.addr %s45, 8
          %s1766 = sadd.s32 %s1762, %s1765
          %s1767 = smul.addr %s1766, 8
          %s1768 = scalar_lea.hbm %s15, %s1767
          %s1769 = sshll.u32 %s1738, 4
          %s1770 = int_to_ptr.vmem [resolvable:$true] %s1769
          %s1771 = sshll.u32 %s1768, 4
          %s1772 = int_to_ptr.hbm [resolvable:$true] %s1771
          %1777 = dma.vmem_to_hbm [thread:$0]  %s1770, 1024, %s1772, %s1735, 128, 128, 8
        $region112: #{tpu_custom_call.1} parent=75 // pred_fallthru
          _
        // Predicated region
        $region113: #{tpu_custom_call.1} parent=75 // pred_check
          %p1778 = pneg %p463
        $region114: #{tpu_custom_call.1} parent=75 // pred_check_branch
          %1780 = sbr.rel (%p1778) target = $region116
        $region115: #{tpu_custom_call.1} parent=75 // pred_region
          %1782 = vsyncadd %s1740, 0
          %s1783 = smul.addr %s45, 4
          %s1784 = scalar_lea.hbm %s16, %s1783
          %s1786 = sshll.u32 %s1743, 4
          %s1787 = int_to_ptr.vmem [resolvable:$true] %s1786
          %s1788 = sshll.u32 %s1784, 4
          %s1789 = int_to_ptr.hbm [resolvable:$true] %s1788
          %1791 = dma.vmem_to_hbm [thread:$0]  %s1787, 64, %s1789, %s1740
        $region116: #{tpu_custom_call.1} parent=75 // pred_fallthru
          _
      $region76: #{tpu_custom_call.1} parent=5 // pred_fallthru
        _
      %p1792 = scmp.le.s32.totalorder 2, %s36
      // Predicated region
      $region117: #{tpu_custom_call.1} parent=5 // pred_check
        %p1793 = pneg %p1792
      $region118: #{tpu_custom_call.1} parent=5 // pred_check_branch
        %1795 = sbr.rel (%p1793) target = $region120
      $region119: #{tpu_custom_call.1} parent=5 // pred_region
        %s1796 = ssub.s32 %s36, 2
        // Predicated region
        $region121: #{tpu_custom_call.1} parent=119 // pred_check
          %p1797 = pneg %p415
        $region122: #{tpu_custom_call.1} parent=119 // pred_check_branch
          %1799 = sbr.rel (%p1797) target = $region124
        $region123: #{tpu_custom_call.1} parent=119 // pred_region
          %s1800 = sand.u32 %s400, 1
          %s1801 = scalar_lea.sflag [#allocation5], %s1800
          %s1802 = sand.u32 %s400, 1
          %s1803 = smul.addr %s1802, 8
          %s1804 = scalar_lea.vmem [#allocation11], %s1803
          %1806 = dma.done %s1801, 128
        $region124: #{tpu_custom_call.1} parent=119 // pred_fallthru
          _
        // Predicated region
        $region125: #{tpu_custom_call.1} parent=119 // pred_check
          %p1807 = pneg %p443
        $region126: #{tpu_custom_call.1} parent=119 // pred_check_branch
          %1809 = sbr.rel (%p1807) target = $region128
        $region127: #{tpu_custom_call.1} parent=119 // pred_region
          %s1810 = sand.u32 %s42, 1
          %s1811 = scalar_lea.sflag [#allocation13], %s1810
          %s1812 = sand.u32 %s428, 1
          %s1813 = smul.addr %s1812, 64
          %s1814 = scalar_lea.vmem [#allocation12], %s1813
          %1816 = dma.done %s1811, 1024
        $region128: #{tpu_custom_call.1} parent=119 // pred_fallthru
          _
        // Predicated region
        $region129: #{tpu_custom_call.1} parent=119 // pred_check
          %p1817 = pneg %p469
        $region130: #{tpu_custom_call.1} parent=119 // pred_check_branch
          %1819 = sbr.rel (%p1817) target = $region132
        $region131: #{tpu_custom_call.1} parent=119 // pred_region
          %s1820 = sand.u32 %s42, 1
          %s1821 = scalar_lea.sflag [#allocation13], %s1820
          %s1822 = sand.u32 %s454, 1
          %s1823 = smul.addr %s1822, 4
          %s1824 = scalar_lea.vmem [#allocation14], %s1823
          %1826 = dma.done %s1821, 64
        $region132: #{tpu_custom_call.1} parent=119 // pred_fallthru
          _
      $region120: #{tpu_custom_call.1} parent=5 // pred_fallthru
        _
    $region6: #{tpu_custom_call.1} parent=1 // loop_footer
      %s40 = sadd.s32 1, %s36
    $region7: #{tpu_custom_call.1} parent=1 // loop_footer_branch
      %35 = sbr.rel target = $region3
    $region8: #{tpu_custom_call.1} parent=1 // loop_exit
      _
    %1827 = vsyncpa [#allocation4], 1
    %s1828 = scalar_lea.sflag [#allocation4], 1
    %1829 = vsyncpa %s1828, 1
    %1830 = vsyncpa [#allocation7], 1
    %s1831 = scalar_lea.sflag [#allocation7], 1
    %1832 = vsyncpa %s1831, 1
    %1833 = vsyncpa [#allocation10], 1
    %1834 = vsyncpa [#allocation5], 1
    %s1835 = scalar_lea.sflag [#allocation5], 1
    %1836 = vsyncpa %s1835, 1
    %1837 = vsyncpa [#allocation13], 1
    %s1838 = scalar_lea.sflag [#allocation13], 1
    %1839 = vsyncpa %s1838, 1

</llo_original>
